<compile_context>
chip_gen: v7x
topology: tpu7x:2x2x1
jax: 0.10.0
libtpu: 0.0.40
codegen_flags: <defaults>
</compile_context>

<pallas_src>
import functools
import math

import jax
import jax.numpy as jnp
from jax.experimental import pallas as pl
from jax.experimental.pallas import tpu as pltpu


_NEG_FILL = -1000000000.0     # matches torch masked_fill_(attn_mask, -1e9)


# ----------------------------------------------------------------------------
# Kernel
# ----------------------------------------------------------------------------
def _sdpa_flash_kernel(*args, scale, tk, use_lens, has_mask):
    # After the optional scalar-prefetch lens ref, refs are:
    #   q_ref:    (Hb, tq, d_k)   current head-block / query tile (pre-scaled here)
    #   k_ref:    (Hb, tk, d_k)   current kv tile
    #   v_ref:    (Hb, tk, d_k)
    #   mask_ref: (Hm, tq, tk)    int8, Hm in {1, Hb}; nonzero == masked out
    #   o_ref:    (Hb, tq, d_k)
    #   m_sc/l_sc:(Hb, tq, 1)     f32 running max / normalizer
    #   acc_sc:   (Hb, tq, d_k)   f32 running (unnormalized) context
    if use_lens:
        lens_ref, args = args[0], args[1:]
    if has_mask:
        q_ref, k_ref, v_ref, mask_ref, o_ref, m_sc, l_sc, acc_sc = args
    else:
        q_ref, k_ref, v_ref, o_ref, m_sc, l_sc, acc_sc = args

    kv = pl.program_id(3)

    @pl.when(kv == 0)
    def _init():
        m_sc[...] = jnp.full_like(m_sc, -jnp.inf)
        l_sc[...] = jnp.zeros_like(l_sc)
        acc_sc[...] = jnp.zeros_like(acc_sc)

    # Fold the softmax scale into Q: a d_k-wide VPU multiply per kv step instead
    # of a tk-wide multiply on the score matrix (tk/d_k ~ 8x fewer VALU ops).
    q = q_ref[...] * scale
    k = k_ref[...]
    v = v_ref[...]

    # scores = (Q/sqrt(d_k)) @ K^T: contract last dims, batch over heads,
    # f32 MXU accumulation, operands stay in their native (possibly bf16) dtype.
    s = jnp.einsum("hqd,hkd->hqk", q, k, preferred_element_type=jnp.float32)

    neg = jnp.float32(_NEG_FILL)
    if has_mask:
        # masked_fill_(attn_mask, -1e9); a (1, tq, tk) mask broadcasts over heads.
        s = jnp.where(mask_ref[...] != 0, neg, s)
    if use_lens:
        # Key-padding mask built in-kernel from per-batch valid lengths:
        # no [B, *, Lq, Lk] mask tensor is streamed from HBM.
        valid = lens_ref[pl.program_id(0)]
        kpos = kv * tk + jax.lax.broadcasted_iota(jnp.int32, (1, 1, tk), 2)
        s = jnp.where(kpos >= valid, neg, s)

    # Online softmax update.
    m_prev = m_sc[...]
    m_new = jnp.maximum(m_prev, jnp.max(s, axis=-1, keepdims=True))
    alpha = jnp.exp(m_prev - m_new)
    p = jnp.exp(s - m_new)
    l_sc[...] = alpha * l_sc[...] + jnp.sum(p, axis=-1, keepdims=True)
    acc_sc[...] = alpha * acc_sc[...] + jnp.einsum(
        "hqk,hkd->hqd", p.astype(v.dtype), v, preferred_element_type=jnp.float32)
    m_sc[...] = m_new

    @pl.when(kv == pl.num_programs(3) - 1)
    def _finalize():
        inv_l = pl.reciprocal(l_sc[...], approx=True)
        o_ref[...] = (acc_sc[...] * inv_l).astype(o_ref.dtype)


# ----------------------------------------------------------------------------
# Tiling / VMEM heuristics
# ----------------------------------------------------------------------------
def _round_up(x, m):
    return -(-x // m) * m


def _pick_q_tile(Lq):
    """Return (tq, Lq_padded): full extent for short Lq, else a 128-multiple tile."""
    if Lq <= 256:
        return Lq, Lq
    pad = _round_up(Lq, 128)
    for cand in (256, 128):
        if pad % cand == 0:
            return cand, pad
    return 128, pad


def _pick_kv_tile(Lk):
    """Return (tk, Lk_padded): full extent for short Lk, else a 128-multiple tile."""
    if Lk <= 512:
        return Lk, Lk
    pad = _round_up(Lk, 128)
    for cand in (512, 256, 128):
        if pad % cand == 0:
            return cand, pad
    return 128, pad


def _padded_bytes(shape, dtype):
    """Physical VMEM footprint: second-minor padded to the sublane tile, minor to 128."""
    dtype = jnp.dtype(dtype)
    item = dtype.itemsize
    packing = max(1, 4 // item)                 # f32:1, bf16:2, int8:4
    shape = tuple(int(d) for d in shape)
    if len(shape) == 0:
        return 4
    if len(shape) == 1:
        return _round_up(shape[0], 8 * packing * 128) * item
    lead = 1
    for d in shape[:-2]:
        lead *= d
    s = _round_up(shape[-2], 8 * packing)
    l = _round_up(shape[-1], 128)
    return lead * s * l * item


def _block_working_set(hb, tq, tk, d_k, compute_dtype, mask_heads, use_lens):
    """Padding-aware per-grid-step VMEM working set (double-buffered I/O blocks)."""
    nbytes = 0
    nbytes += 2 * _padded_bytes((hb, tq, d_k), compute_dtype)        # Q block x2
    nbytes += 2 * 2 * _padded_bytes((hb, tk, d_k), compute_dtype)    # K, V blocks x2
    if not use_lens:
        mh = 1 if mask_heads == 1 else hb
        nbytes += 2 * _padded_bytes((mh, tq, tk), jnp.int8)          # mask block x2
    nbytes += 2 * _padded_bytes((hb, tq, d_k), compute_dtype)        # O block x2
    nbytes += 2 * _padded_bytes((hb, tq, 1), jnp.float32)            # m, l scratch
    nbytes += _padded_bytes((hb, tq, d_k), jnp.float32)              # acc scratch
    nbytes += 2 * _padded_bytes((hb, tq, tk), jnp.float32)           # live f32 s / p
    return nbytes


def _vmem_capacity_bytes():
    try:
        cap = int(pltpu.get_tpu_info().vmem_capacity_bytes)
        if cap > 0:
            return cap
    except Exception:
        pass
    return 64 * 1024 * 1024    # conservative fallback (v7x per-TensorCore)


def _pick_head_block(B, H, num_q, tq, tk, d_k, compute_dtype, mask_heads,
                     use_lens, budget):
    divisors = [hb for hb in range(H, 0, -1) if H % hb == 0]
    fitting = [hb for hb in divisors
               if _block_working_set(hb, tq, tk, d_k, compute_dtype, mask_heads,
                                     use_lens) <= budget]
    if not fitting:
        return 1
    # Keep >= 2 parallel grid units whenever possible (v7x: 2 TensorCores/chip).
    max_units = B * H * num_q
    target_units = 2 if max_units >= 2 else 1
    for hb in fitting:                           # descending: prefer the largest block
        if B * (H // hb) * num_q >= target_units:
            return hb
    return fitting[-1]


# ----------------------------------------------------------------------------
# Wrapper
# ----------------------------------------------------------------------------
def scaled_dot_product_attention(Q, K, V, attn_mask=None, *, d_model, head,
                                 kv_valid_len=None, compute_dtype=None):
    """Flash-attention forward matching ScaledDotProductAttention.forward.

    Q, K, V:       [B, H, L, d_k]
    attn_mask:     [B, H|1, Lq, Lk] (or [Lq,Lk]/[B,Lq,Lk]); nonzero == masked out.
    kv_valid_len:  optional [B] int32 key-padding lengths; when given, the mask is
                   built in-kernel (key position >= length is masked) and no mask
                   tensor is streamed from HBM.
    compute_dtype: optional dtype (e.g. jnp.bfloat16) for in-kernel matmul operands.
    """
    B, H, Lq, d_k = Q.shape
    Lk = K.shape[2]
    assert d_model // head == d_k, "d_model // head must equal the trailing dim of Q"
    scale = 1.0 / math.sqrt(d_k)
    out_dtype = Q.dtype

    cdt = jnp.dtype(compute_dtype) if compute_dtype is not None else jnp.dtype(Q.dtype)
    Q = Q.astype(cdt)
    K = K.astype(cdt)
    V = V.astype(cdt)

    use_lens = kv_valid_len is not None
    if use_lens:
        lens = jnp.asarray(kv_valid_len, dtype=jnp.int32)
        if lens.ndim == 0:
            lens = jnp.full((B,), lens, dtype=jnp.int32)
        assert lens.shape == (B,)
        mask = None
        Hm = 0
    else:
        assert attn_mask is not None, "provide attn_mask or kv_valid_len"
        mask = jnp.asarray(attn_mask)
        if mask.ndim == 2:
            mask = mask[None, None]
        elif mask.ndim == 3:
            mask = mask[:, None]
        assert mask.ndim == 4
        Hm = mask.shape[1]
        assert Hm in (1, H), "mask head dim must be 1 or H"
        # int8 (4x less HBM traffic than int32); head-invariant masks stay [B,1,...].
        mask = jnp.broadcast_to(mask, (B, Hm, Lq, Lk)).astype(jnp.int8)
        lens = None

    tq, Lq_pad = _pick_q_tile(Lq)
    tk, Lk_pad = _pick_kv_tile(Lk)

    if Lq_pad != Lq:
        qp = Lq_pad - Lq
        Q = jnp.pad(Q, ((0, 0), (0, 0), (0, qp), (0, 0)))
        if mask is not None:
            mask = jnp.pad(mask, ((0, 0), (0, 0), (0, qp), (0, 0)))
    if Lk_pad != Lk:
        kp = Lk_pad - Lk
        K = jnp.pad(K, ((0, 0), (0, 0), (0, kp), (0, 0)))
        V = jnp.pad(V, ((0, 0), (0, 0), (0, kp), (0, 0)))
        if mask is not None:
            # Padded key positions must be masked out.
            mask = jnp.pad(mask, ((0, 0), (0, 0), (0, 0), (0, kp)), constant_values=1)
        # lens path: padded key positions are >= valid length automatically.

    num_q = Lq_pad // tq
    num_kv = Lk_pad // tk

    vmem_cap = _vmem_capacity_bytes()
    budget = vmem_cap // 4            # generation-aware: ~32 MiB on 128-MiB parts, ~16 MiB on v7x
    Hb = _pick_head_block(B, H, num_q, tq, tk, d_k, cdt, Hm, use_lens, budget)
    G = H // Hb

    ws = _block_working_set(Hb, tq, tk, d_k, cdt, Hm, use_lens)
    vmem_limit = int(min(int(vmem_cap * 0.8), max(2 * ws, 32 * 1024 * 1024)))

    kernel = functools.partial(_sdpa_flash_kernel, scale=scale, tk=tk,
                               use_lens=use_lens, has_mask=mask is not None)

    # index_maps receive the scalar-prefetch lens ref as a trailing positional arg.
    if use_lens:
        def _wrap(f):
            return lambda b, h, qi, kv, lens_ref: f(b, h, qi, kv)
    else:
        def _wrap(f):
            return lambda b, h, qi, kv: f(b, h, qi, kv)

    q_spec = pl.BlockSpec((None, Hb, tq, d_k), _wrap(lambda b, h, qi, kv: (b, h, qi, 0)))
    k_spec = pl.BlockSpec((None, Hb, tk, d_k), _wrap(lambda b, h, qi, kv: (b, h, kv, 0)))
    v_spec = pl.BlockSpec((None, Hb, tk, d_k), _wrap(lambda b, h, qi, kv: (b, h, kv, 0)))
    out_spec = pl.BlockSpec((None, Hb, tq, d_k), _wrap(lambda b, h, qi, kv: (b, h, qi, 0)))

    in_specs = [q_spec, k_spec, v_spec]
    call_inputs = [Q, K, V]
    if mask is not None:
        if Hm == 1:
            # Head-invariant mask: never expanded to H copies in HBM.
            mask_spec = pl.BlockSpec((None, 1, tq, tk),
                                     _wrap(lambda b, h, qi, kv: (b, 0, qi, kv)))
        else:
            mask_spec = pl.BlockSpec((None, Hb, tq, tk),
                                     _wrap(lambda b, h, qi, kv: (b, h, qi, kv)))
        in_specs.append(mask_spec)
        call_inputs.append(mask)

    # Advisory cost estimate for the XLA scheduler.
    itm = cdt.itemsize
    flops = 4 * B * H * Lq_pad * Lk_pad * d_k          # two matmuls, 2 flops/MAC
    transcendentals = B * H * Lq_pad * Lk_pad          # exp
    bytes_accessed = (Q.size * itm + (K.size + V.size) * itm * num_q
                      + B * H * Lq_pad * d_k * itm)
    if mask is not None:
        bytes_accessed += mask.size * (G if Hm == 1 else 1)
    else:
        bytes_accessed += B * 4

    grid_spec = pltpu.PrefetchScalarGridSpec(
        num_scalar_prefetch=1 if use_lens else 0,
        grid=(B, G, num_q, num_kv),
        in_specs=in_specs,
        out_specs=out_spec,
        scratch_shapes=[
            pltpu.VMEM((Hb, tq, 1), jnp.float32),      # running max m
            pltpu.VMEM((Hb, tq, 1), jnp.float32),      # running normalizer l
            pltpu.VMEM((Hb, tq, d_k), jnp.float32),    # running (unnormalized) context
        ],
    )

    call = pl.pallas_call(
        kernel,
        out_shape=jax.ShapeDtypeStruct((B, H, Lq_pad, d_k), cdt),
        grid_spec=grid_spec,
        compiler_params=pltpu.CompilerParams(
            dimension_semantics=("parallel", "parallel", "parallel", "arbitrary"),
            vmem_limit_bytes=vmem_limit,
        ),
        cost_estimate=pl.CostEstimate(
            flops=int(flops),
            transcendentals=int(transcendentals),
            bytes_accessed=int(bytes_accessed),
        ),
    )

    out = call(lens, *call_inputs) if use_lens else call(*call_inputs)

    if Lq_pad != Lq:
        out = out[:, :, :Lq, :]
    return out.astype(out_dtype)


# ----------------------------------------------------------------------------
# Reference (pure JAX) and self-test
# ----------------------------------------------------------------------------
def reference_attention(Q, K, V, attn_mask, *, d_model, head):
    d_k = d_model // head
    scores = jnp.einsum("bhqd,bhkd->bhqk",
                        Q.astype(jnp.float32), K.astype(jnp.float32))
    scores = scores / jnp.sqrt(jnp.float32(d_k))
    scores = jnp.where(attn_mask, jnp.float32(_NEG_FILL), scores)
    attn = jax.nn.softmax(scores, axis=-1)
    return jnp.einsum("bhqk,bhkd->bhqd", attn, V.astype(jnp.float32))


if __name__ == "__main__":
    # args.d_model = 32, args.head = 4  =>  d_k = 8
    B, H, L = 2, 4, 8
    d_model, head = 32, 4
    d_k = d_model // head

    key = jax.random.PRNGKey(0)
    kq, kk, kvk, km = jax.random.split(key, 4)
    Q = jax.random.normal(kq, (B, H, L, d_k), dtype=jnp.float32)
    K = jax.random.normal(kk, (B, H, L, d_k), dtype=jnp.float32)
    V = jax.random.normal(kvk, (B, H, L, d_k), dtype=jnp.float32)

    # 1) Key-padding mask expressed as per-batch valid lengths (fast path:
    #    mask built in-kernel, nothing streamed from HBM).
    valid = L - 2
    pad_mask = jnp.broadcast_to(
        (jnp.arange(L) >= valid)[None, None, None, :], (B, 1, L, L))
    ref_pad = reference_attention(Q, K, V, pad_mask, d_model=d_model, head=head)

    out1 = scaled_dot_product_attention(
        Q, K, V, kv_valid_len=jnp.full((B,), valid, jnp.int32),
        d_model=d_model, head=head)
    out1 = jax.block_until_ready(out1)
    assert out1.shape == (B, H, L, d_k)
    assert jnp.allclose(out1, ref_pad, atol=2e-3, rtol=2e-3), "mismatch (length path)"

    # 2) Same padding mask, streamed as a head-invariant [B, 1, L, L] int8 mask.
    out2 = scaled_dot_product_attention(Q, K, V, pad_mask,
                                        d_model=d_model, head=head)
    out2 = jax.block_until_ready(out2)
    assert jnp.allclose(out2, ref_pad, atol=2e-3, rtol=2e-3), "mismatch (padding mask)"

    # 3) General per-head mask [B, H, L, L].
    full_mask = jax.random.bernoulli(km, 0.25, (B, H, L, L))
    out3 = scaled_dot_product_attention(Q, K, V, full_mask,
                                        d_model=d_model, head=head)
    out3 = jax.block_until_ready(out3)
    ref_full = reference_attention(Q, K, V, full_mask, d_model=d_model, head=head)
    assert jnp.allclose(out3, ref_full, atol=2e-3, rtol=2e-3), "mismatch (per-head mask)"

    # 4) bf16 compute path (halves Q/K/V HBM bytes, bf16 MXU); looser tolerance.
    out4 = scaled_dot_product_attention(Q, K, V, pad_mask, d_model=d_model,
                                        head=head, compute_dtype=jnp.bfloat16)
    out4 = jax.block_until_ready(out4)
    assert out4.dtype == Q.dtype
    assert jnp.allclose(out4, ref_pad, atol=5e-2, rtol=5e-2), "mismatch (bf16 path)"

    print("KERNEL_OK")
</pallas_src>

<mosaic_0001>
module attributes {stable_mosaic.version = 11 : i64} {
  func.func @_sdpa_flash_kernel(%arg0: i32, %arg1: i32, %arg2: i32, %arg3: i32, %arg4: memref<2xi32, #tpu.memory_space<smem>>, %arg5: memref<1x4x8x8xf32, #tpu.memory_space<vmem>>, %arg6: memref<1x4x8x8xf32, #tpu.memory_space<vmem>>, %arg7: memref<1x4x8x8xf32, #tpu.memory_space<vmem>>, %arg8: memref<1x4x8x8xf32, #tpu.memory_space<vmem>>, %arg9: memref<4x8x1xf32, #tpu.memory_space<vmem>>, %arg10: memref<4x8x1xf32, #tpu.memory_space<vmem>>, %arg11: memref<4x8x8xf32, #tpu.memory_space<vmem>>) attributes {dimension_semantics = [#tpu.dimension_semantics<parallel>, #tpu.dimension_semantics<parallel>, #tpu.dimension_semantics<parallel>, #tpu.dimension_semantics<arbitrary>], iteration_bounds = array<i64: 2, 1, 1, 1>, scalar_prefetch = 1 : i64, scratch_operands = 3 : i64, tpu.core_type = #tpu.core_type<tc>, window_params = [{transform_indices = @transform_0, window_bounds = array<i64: 1, 4, 8, 8>}, {transform_indices = @transform_1, window_bounds = array<i64: 1, 4, 8, 8>}, {transform_indices = @transform_2, window_bounds = array<i64: 1, 4, 8, 8>}, {transform_indices = @transform_3, window_bounds = array<i64: 1, 4, 8, 8>}]} {
    %c0_i32 = arith.constant 0 : i32
    %0 = arith.cmpi eq, %arg3, %c0_i32 : i32
    %1 = arith.extui %0 : i1 to i32
    %c0_i32_0 = arith.constant 0 : i32
    %2 = arith.cmpi ne, %1, %c0_i32_0 : i32
    scf.if %2 {
      %cst_37 = arith.constant 0xFF800000 : f32
      %49 = vector.broadcast %cst_37 : f32 to vector<4x8x1xf32>
      %c0_38 = arith.constant 0 : index
      %c0_39 = arith.constant 0 : index
      %c0_40 = arith.constant 0 : index
      %50 = vector.load %arg9[%c0_38, %c0_39, %c0_40] : memref<4x8x1xf32, #tpu.memory_space<vmem>>, vector<4x8x1xf32>
      tpu.vector_store %arg9[%c0_38, %c0_39, %c0_40], %49 {strides = array<i32>} : memref<4x8x1xf32, #tpu.memory_space<vmem>>, vector<4x8x1xf32>,
      %cst_41 = arith.constant 0.000000e+00 : f32
      %51 = vector.broadcast %cst_41 : f32 to vector<4x8x1xf32>
      %c0_42 = arith.constant 0 : index
      %c0_43 = arith.constant 0 : index
      %c0_44 = arith.constant 0 : index
      %52 = vector.load %arg10[%c0_42, %c0_43, %c0_44] : memref<4x8x1xf32, #tpu.memory_space<vmem>>, vector<4x8x1xf32>
      tpu.vector_store %arg10[%c0_42, %c0_43, %c0_44], %51 {strides = array<i32>} : memref<4x8x1xf32, #tpu.memory_space<vmem>>, vector<4x8x1xf32>,
      %cst_45 = arith.constant 0.000000e+00 : f32
      %53 = vector.broadcast %cst_45 : f32 to vector<4x8x8xf32>
      %c0_46 = arith.constant 0 : index
      %c0_47 = arith.constant 0 : index
      %c0_48 = arith.constant 0 : index
      %54 = vector.load %arg11[%c0_46, %c0_47, %c0_48] : memref<4x8x8xf32, #tpu.memory_space<vmem>>, vector<4x8x8xf32>
      tpu.vector_store %arg11[%c0_46, %c0_47, %c0_48], %53 {strides = array<i32>} : memref<4x8x8xf32, #tpu.memory_space<vmem>>, vector<4x8x8xf32>,
    } else {
    }
    %c0 = arith.constant 0 : index
    %c0_1 = arith.constant 0 : index
    %c0_2 = arith.constant 0 : index
    %c0_3 = arith.constant 0 : index
    %3 = vector.load %arg5[%c0, %c0_1, %c0_2, %c0_3] : memref<1x4x8x8xf32, #tpu.memory_space<vmem>>, vector<1x4x8x8xf32>
    %4 = vector.shape_cast %3 : vector<1x4x8x8xf32> to vector<4x8x8xf32>
    %cst = arith.constant 0.353553385 : f32
    %5 = vector.broadcast %cst : f32 to vector<4x8x8xf32>
    %6 = arith.mulf %4, %5 : vector<4x8x8xf32>
    %c0_4 = arith.constant 0 : index
    %c0_5 = arith.constant 0 : index
    %c0_6 = arith.constant 0 : index
    %c0_7 = arith.constant 0 : index
    %7 = vector.load %arg6[%c0_4, %c0_5, %c0_6, %c0_7] : memref<1x4x8x8xf32, #tpu.memory_space<vmem>>, vector<1x4x8x8xf32>
    %8 = vector.shape_cast %7 : vector<1x4x8x8xf32> to vector<4x8x8xf32>
    %c0_8 = arith.constant 0 : index
    %c0_9 = arith.constant 0 : index
    %c0_10 = arith.constant 0 : index
    %c0_11 = arith.constant 0 : index
    %9 = vector.load %arg7[%c0_8, %c0_9, %c0_10, %c0_11] : memref<1x4x8x8xf32, #tpu.memory_space<vmem>>, vector<1x4x8x8xf32>
    %10 = vector.shape_cast %9 : vector<1x4x8x8xf32> to vector<4x8x8xf32>
    "tpu.trace_start"() <{level = 10 : i32, message = "hqd,hkd->hqk"}> : () -> ()
    %cst_12 = arith.constant dense<0.000000e+00> : vector<4x8x8xf32>
    %11 = tpu.matmul %6, %8, %cst_12 {dimension_numbers = #tpu.dot_dimension_numbers<[2], [2], [1], [1], [0, 0, 0, 1, 1, 1], [0], [0]>} : vector<4x8x8xf32>, vector<4x8x8xf32>, vector<4x8x8xf32> -> vector<4x8x8xf32>
    "tpu.trace_stop"() : () -> ()
    %12 = arith.index_cast %arg0 : i32 to index
    %13 = memref.load %arg4[%12] : memref<2xi32, #tpu.memory_space<smem>>
    %c8_i32 = arith.constant 8 : i32
    %14 = arith.muli %arg3, %c8_i32 : i32
    %15 = tpu.iota {dimensions = array<i32: 2>} : vector<1x1x8xi32>
    %16 = vector.broadcast %14 : i32 to vector<1x1x8xi32>
    %17 = arith.addi %16, %15 : vector<1x1x8xi32>
    %18 = vector.broadcast %13 : i32 to vector<1x1x8xi32>
    %19 = arith.cmpi sge, %17, %18 : vector<1x1x8xi32>
    %cst_13 = arith.constant -1.000000e+09 : f32
    %20 = vector.shape_cast %19 : vector<1x1x8xi1> to vector<1x1x8xi1>
    %21 = vector.broadcast %20 : vector<1x1x8xi1> to vector<4x8x8xi1>
    %22 = vector.broadcast %cst_13 : f32 to vector<4x8x8xf32>
    %23 = arith.select %21, %22, %11 : vector<4x8x8xi1>, vector<4x8x8xf32>
    %c0_14 = arith.constant 0 : index
    %c0_15 = arith.constant 0 : index
    %c0_16 = arith.constant 0 : index
    %24 = vector.load %arg9[%c0_14, %c0_15, %c0_16] : memref<4x8x1xf32, #tpu.memory_space<vmem>>, vector<4x8x1xf32>
    %cst_17 = arith.constant dense<0xFF800000> : vector<4x8xf32>
    %25 = vector.multi_reduction <maximumf>, %23, %cst_17 [2] : vector<4x8x8xf32> to vector<4x8xf32>
    %26 = vector.shape_cast %25 : vector<4x8xf32> to vector<4x8x1xf32>
    %27 = arith.maximumf %24, %26 : vector<4x8x1xf32>
    %28 = arith.subf %24, %27 : vector<4x8x1xf32>
    %29 = math.exp %28 : vector<4x8x1xf32>
    %30 = vector.broadcast %27 : vector<4x8x1xf32> to vector<4x8x8xf32>
    %31 = arith.subf %23, %30 : vector<4x8x8xf32>
    %32 = math.exp %31 : vector<4x8x8xf32>
    %c0_18 = arith.constant 0 : index
    %c0_19 = arith.constant 0 : index
    %c0_20 = arith.constant 0 : index
    %33 = vector.load %arg10[%c0_18, %c0_19, %c0_20] : memref<4x8x1xf32, #tpu.memory_space<vmem>>, vector<4x8x1xf32>
    %34 = arith.mulf %29, %33 : vector<4x8x1xf32>
    %cst_21 = arith.constant dense<0.000000e+00> : vector<4x8xf32>
    %35 = vector.multi_reduction <add>, %32, %cst_21 [2] : vector<4x8x8xf32> to vector<4x8xf32>
    %36 = vector.shape_cast %35 : vector<4x8xf32> to vector<4x8x1xf32>
    %37 = arith.addf %34, %36 : vector<4x8x1xf32>
    %c0_22 = arith.constant 0 : index
    %c0_23 = arith.constant 0 : index
    %c0_24 = arith.constant 0 : index
    %38 = vector.load %arg10[%c0_22, %c0_23, %c0_24] : memref<4x8x1xf32, #tpu.memory_space<vmem>>, vector<4x8x1xf32>
    tpu.vector_store %arg10[%c0_22, %c0_23, %c0_24], %37 {strides = array<i32>} : memref<4x8x1xf32, #tpu.memory_space<vmem>>, vector<4x8x1xf32>,
    %c0_25 = arith.constant 0 : index
    %c0_26 = arith.constant 0 : index
    %c0_27 = arith.constant 0 : index
    %39 = vector.load %arg11[%c0_25, %c0_26, %c0_27] : memref<4x8x8xf32, #tpu.memory_space<vmem>>, vector<4x8x8xf32>
    %40 = vector.broadcast %29 : vector<4x8x1xf32> to vector<4x8x8xf32>
    %41 = arith.mulf %40, %39 : vector<4x8x8xf32>
    "tpu.trace_start"() <{level = 10 : i32, message = "hqk,hkd->hqd"}> : () -> ()
    %cst_28 = arith.constant dense<0.000000e+00> : vector<4x8x8xf32>
    %42 = tpu.matmul %32, %10, %cst_28 {dimension_numbers = #tpu.dot_dimension_numbers<[2], [1], [1], [2], [0, 0, 0, 1, 1, 2], [0], [0]>} : vector<4x8x8xf32>, vector<4x8x8xf32>, vector<4x8x8xf32> -> vector<4x8x8xf32>
    "tpu.trace_stop"() : () -> ()
    %43 = arith.addf %41, %42 : vector<4x8x8xf32>
    %c0_29 = arith.constant 0 : index
    %c0_30 = arith.constant 0 : index
    %c0_31 = arith.constant 0 : index
    %44 = vector.load %arg11[%c0_29, %c0_30, %c0_31] : memref<4x8x8xf32, #tpu.memory_space<vmem>>, vector<4x8x8xf32>
    tpu.vector_store %arg11[%c0_29, %c0_30, %c0_31], %43 {strides = array<i32>} : memref<4x8x8xf32, #tpu.memory_space<vmem>>, vector<4x8x8xf32>,
    %c0_32 = arith.constant 0 : index
    %c0_33 = arith.constant 0 : index
    %c0_34 = arith.constant 0 : index
    %45 = vector.load %arg9[%c0_32, %c0_33, %c0_34] : memref<4x8x1xf32, #tpu.memory_space<vmem>>, vector<4x8x1xf32>
    tpu.vector_store %arg9[%c0_32, %c0_33, %c0_34], %27 {strides = array<i32>} : memref<4x8x1xf32, #tpu.memory_space<vmem>>, vector<4x8x1xf32>,
    %c0_i32_35 = arith.constant 0 : i32
    %46 = arith.cmpi eq, %arg3, %c0_i32_35 : i32
    %47 = arith.extui %46 : i1 to i32
    %c0_i32_36 = arith.constant 0 : i32
    %48 = arith.cmpi ne, %47, %c0_i32_36 : i32
    scf.if %48 {
      %c0_37 = arith.constant 0 : index
      %c0_38 = arith.constant 0 : index
      %c0_39 = arith.constant 0 : index
      %49 = vector.load %arg10[%c0_37, %c0_38, %c0_39] : memref<4x8x1xf32, #tpu.memory_space<vmem>>, vector<4x8x1xf32>
      %50 = tpu.reciprocal %49 {approx = true} : vector<4x8x1xf32> -> vector<4x8x1xf32>
      %c0_40 = arith.constant 0 : index
      %c0_41 = arith.constant 0 : index
      %c0_42 = arith.constant 0 : index
      %51 = vector.load %arg11[%c0_40, %c0_41, %c0_42] : memref<4x8x8xf32, #tpu.memory_space<vmem>>, vector<4x8x8xf32>
      %52 = vector.broadcast %50 : vector<4x8x1xf32> to vector<4x8x8xf32>
      %53 = arith.mulf %51, %52 : vector<4x8x8xf32>
      %c0_43 = arith.constant 0 : index
      %c0_44 = arith.constant 0 : index
      %c0_45 = arith.constant 0 : index
      %c0_46 = arith.constant 0 : index
      %54 = vector.load %arg8[%c0_43, %c0_44, %c0_45, %c0_46] : memref<1x4x8x8xf32, #tpu.memory_space<vmem>>, vector<1x4x8x8xf32>
      %55 = vector.shape_cast %54 : vector<1x4x8x8xf32> to vector<4x8x8xf32>
      %56 = vector.shape_cast %53 : vector<4x8x8xf32> to vector<1x4x8x8xf32>
      tpu.vector_store %arg8[%c0_43, %c0_44, %c0_45, %c0_46], %56 {strides = array<i32>} : memref<1x4x8x8xf32, #tpu.memory_space<vmem>>, vector<1x4x8x8xf32>,
    } else {
    }
    return
  }
  func.func @transform_0(%arg0: i32, %arg1: i32, %arg2: i32, %arg3: i32, %arg4: memref<2xi32, #tpu.memory_space<smem>>) -> (i32, i32, i32, i32) {
    %c0_i32 = arith.constant 0 : i32
    %c0_i32_0 = arith.constant 0 : i32
    return %arg0, %arg1, %arg2, %c0_i32 : i32, i32, i32, i32
  }
  func.func @transform_1(%arg0: i32, %arg1: i32, %arg2: i32, %arg3: i32, %arg4: memref<2xi32, #tpu.memory_space<smem>>) -> (i32, i32, i32, i32) {
    %c0_i32 = arith.constant 0 : i32
    %c0_i32_0 = arith.constant 0 : i32
    return %arg0, %arg1, %arg3, %c0_i32 : i32, i32, i32, i32
  }
  func.func @transform_2(%arg0: i32, %arg1: i32, %arg2: i32, %arg3: i32, %arg4: memref<2xi32, #tpu.memory_space<smem>>) -> (i32, i32, i32, i32) {
    %c0_i32 = arith.constant 0 : i32
    %c0_i32_0 = arith.constant 0 : i32
    return %arg0, %arg1, %arg3, %c0_i32 : i32, i32, i32, i32
  }
  func.func @transform_3(%arg0: i32, %arg1: i32, %arg2: i32, %arg3: i32, %arg4: memref<2xi32, #tpu.memory_space<smem>>) -> (i32, i32, i32, i32) {
    %c0_i32 = arith.constant 0 : i32
    %c0_i32_0 = arith.constant 0 : i32
    return %arg0, %arg1, %arg2, %c0_i32 : i32, i32, i32, i32
  }
}

</mosaic_0001>

<llo_original>
// kernel: tpu_custom_call.1
$region0: #{tpu_custom_call.1}
  #allocation0 [shape = 'u32[]', space=smem, size = 0x4, offset = 0x4, fixed_abs, tag = 'smem constant byte address 0x4 - core index']
  #allocation1 [shape = 'u32[144,128]{1,0:T(1,128)}', space=vmem, size = 0x12000, scoped, tag = 'internal scratch']
  #allocation2 [shape = 'f32[4,8,1]{2,1,0:T(8,128)}', space=vmem, size = 0x4000, scoped, tag = 'scratch operand']
  #allocation3 [shape = 'f32[4,8,1]{2,1,0:T(8,128)}', space=vmem, size = 0x4000, scoped, tag = 'scratch operand']
  #allocation4 [shape = 'f32[4,8,8]{2,1,0:T(8,128)}', space=vmem, size = 0x4000, scoped, tag = 'scratch operand']
  #allocation5 [shape = 's32[1]{0}', space=sflag, size = 0x4, scoped, tag = 'scoped memory for tpu_custom_call.1']
  #allocation6 [shape = 'u8[512]{0}', space=smem, size = 0x200, scoped, tag = 'prefetched SMEM operand 0']
  %s0 = inlined_call_operand.hbm [shape: s32[2], index: 0, kind: input, shape index: {}]
  %s1 = inlined_call_operand.hbm [shape: f32[2,4,8,8], index: 1, kind: input, shape index: {}]
  %s2 = inlined_call_operand.hbm [shape: f32[2,4,8,8], index: 2, kind: input, shape index: {}]
  %s3 = inlined_call_operand.hbm [shape: f32[2,4,8,8], index: 3, kind: input, shape index: {}]
  %s4 = inlined_call_operand.hbm [shape: f32[2,4,8,8], index: 4, kind: output, shape index: {}]
  %s5 = sld [smem:[#allocation0]]
  $region65: #{tpu_custom_call.1} parent=0
    _
  %s7 = ssub.s32 1, %s5
  %s8 = scalar_select 0, %s7, %s5
  %10 = dma.hbm_to_smem %s0, 16, [#allocation6], [#allocation5]
  %11 = dma.done [#allocation5], 16
  %12 = sfence
  $region1: #{tpu_custom_call.1} parent=0
    #allocation7 [shape = 'u8[32768]{0}', space=vmem, size = 0x8000, scoped, tag = 'input window, operand 1']
    #allocation8 [shape = 's32[2]{0}', space=sflag, size = 0x8, scoped, tag = 'scoped memory for tpu_custom_call.1']
    #allocation9 [shape = 's32[2]{0}', space=sflag, size = 0x8, scoped, tag = 'scoped memory for tpu_custom_call.1']
    #allocation10 [shape = 'u8[32768]{0}', space=vmem, size = 0x8000, scoped, tag = 'input window, operand 2']
    #allocation11 [shape = 's32[2]{0}', space=sflag, size = 0x8, scoped, tag = 'scoped memory for tpu_custom_call.1']
    #allocation12 [shape = 'u8[32768]{0}', space=vmem, size = 0x8000, scoped, tag = 'input window, operand 3']
    #allocation13 [shape = 'u8[32768]{0}', space=vmem, size = 0x8000, scoped, tag = 'output window, operand 0']
    %13 = vsyncpa [#allocation8], 0
    %s14 = scalar_lea.sflag [#allocation8], 1
    %15 = vsyncpa %s14, 0
    %16 = vsyncpa [#allocation11], 0
    %s17 = scalar_lea.sflag [#allocation11], 1
    %18 = vsyncpa %s17, 0
    %19 = vsyncpa [#allocation9], 0
    %s20 = scalar_lea.sflag [#allocation9], 1
    %21 = vsyncpa %s20, 0
    loop: start=0, step=1, limit=4
    $region2: #{tpu_custom_call.1} parent=1 // loop_pre_header
      _
    $region3: #{tpu_custom_call.1} parent=1 // loop_header
      %s23 = sphi 0, %s27
      %p24 = scmp.ge.s32.totalorder %s23, 4
      %s30 = sphi 0, %s56
      %s31 = sphi 0, %s52
      %s32 = sphi 0, %s48
      %s33 = sphi 0, %s44
      %s34 = sphi 0, %s30
      %s35 = sphi 0, %s31
      %s36 = sphi 0, %s32
      %s37 = sphi 0, %s33
      %s38 = sphi 0, %s34
      %s39 = sphi 0, %s35
      %s40 = sphi 0, %s36
      %s41 = sphi 0, %s37
      %s63 = sphi 0, %s65
      %s66 = sphi 0, %s63
      %s67 = sphi 0, %s66
      %s83 = sphi 0, %s67
      %s93 = sphi 0, %s95
      %s96 = sphi 0, %s93
      %s97 = sphi 0, %s96
      %s113 = sphi 0, %s97
      %s123 = sphi 0, %s125
      %s126 = sphi 0, %s123
      %s127 = sphi 0, %s126
      %s143 = sphi 0, %s127
      %s153 = sphi 0, %s155
      %s156 = sphi 0, %s153
      %s157 = sphi 0, %s156
      %s173 = sphi 0, %s157
    $region4: #{tpu_custom_call.1} parent=1 // loop_header_branch
      %26 = sbr.rel (%p24) target = $region8
    $region5: #{tpu_custom_call.1} parent=1 // loop_body
      %s28 = ssub.s32 %s23, 1
      %s29 = ssub.s32 %s23, 2
      %s42 = sadd.s32 1, %s33
      %p43 = scmp.ge.s32.totalorder %s42, 1
      %s44 = scalar_select %p43, 0, %s42
      %s45 = sadd.s32 1, %s32
      %s46 = scalar_select %p43, %s45, %s32
      %p47 = scmp.ge.s32.totalorder %s46, 1
      %s48 = scalar_select %p47, 0, %s46
      %s49 = sadd.s32 1, %s31
      %s50 = scalar_select %p47, %s49, %s31
      %p51 = scmp.ge.s32.totalorder %s50, 1
      %s52 = scalar_select %p51, 0, %s50
      %s53 = sadd.s32 1, %s30
      %s54 = scalar_select %p51, %s53, %s30
      %p55 = scmp.ge.s32.totalorder %s54, 2
      %s56 = scalar_select %p55, 0, %s54
      %s57 = ssub.s32 %s30, %s56
      %s58 = ssub.s32 %s31, %s52
      %s59 = sor.u32 %s57, %s58
      %s60 = ssub.s32 %s32, %s48
      %s61 = sor.u32 %s59, %s60
      %p62 = scmp.eq.s32.totalorder %s61, 0
      %s64 = sadd.s32 %s63, 1
      %s65 = scalar_select %p62, %s63, %s64
      %p68 = pneg %p62
      %p69 = scmp.eq.s32.totalorder %s23, 1
      %p70 = por %p68, %p69
      %p71 = scmp.ne.s32.totalorder %s63, %s66
      %p72 = scmp.eq.s32.totalorder %s23, 0
      %p73 = por %p71, %p72
      %p74 = scmp.ne.s32.totalorder %s63, %s66
      %p75 = scmp.eq.s32.totalorder %s28, 1
      %p76 = por %p74, %p75
      %p77 = scmp.ne.s32.totalorder %s66, %s67
      %p78 = scmp.eq.s32.totalorder %s28, 0
      %p79 = por %p77, %p78
      %p80 = scmp.ne.s32.totalorder %s66, %s67
      %p81 = scmp.eq.s32.totalorder %s29, 1
      %p82 = por %p80, %p81
      %p84 = scmp.ne.s32.totalorder %s67, %s83
      %p85 = scmp.eq.s32.totalorder %s29, 0
      %p86 = por %p84, %p85
      %s87 = ssub.s32 %s30, %s56
      %s88 = ssub.s32 %s31, %s52
      %s89 = sor.u32 %s87, %s88
      %s90 = ssub.s32 %s33, %s44
      %s91 = sor.u32 %s89, %s90
      %p92 = scmp.eq.s32.totalorder %s91, 0
      %s94 = sadd.s32 %s93, 1
      %s95 = scalar_select %p92, %s93, %s94
      %p98 = pneg %p92
      %p99 = scmp.eq.s32.totalorder %s23, 1
      %p100 = por %p98, %p99
      %p101 = scmp.ne.s32.totalorder %s93, %s96
      %p102 = scmp.eq.s32.totalorder %s23, 0
      %p103 = por %p101, %p102
      %p104 = scmp.ne.s32.totalorder %s93, %s96
      %p105 = scmp.eq.s32.totalorder %s28, 1
      %p106 = por %p104, %p105
      %p107 = scmp.ne.s32.totalorder %s96, %s97
      %p108 = scmp.eq.s32.totalorder %s28, 0
      %p109 = por %p107, %p108
      %p110 = scmp.ne.s32.totalorder %s96, %s97
      %p111 = scmp.eq.s32.totalorder %s29, 1
      %p112 = por %p110, %p111
      %p114 = scmp.ne.s32.totalorder %s97, %s113
      %p115 = scmp.eq.s32.totalorder %s29, 0
      %p116 = por %p114, %p115
      %s117 = ssub.s32 %s30, %s56
      %s118 = ssub.s32 %s31, %s52
      %s119 = sor.u32 %s117, %s118
      %s120 = ssub.s32 %s33, %s44
      %s121 = sor.u32 %s119, %s120
      %p122 = scmp.eq.s32.totalorder %s121, 0
      %s124 = sadd.s32 %s123, 1
      %s125 = scalar_select %p122, %s123, %s124
      %p128 = pneg %p122
      %p129 = scmp.eq.s32.totalorder %s23, 1
      %p130 = por %p128, %p129
      %p131 = scmp.ne.s32.totalorder %s123, %s126
      %p132 = scmp.eq.s32.totalorder %s23, 0
      %p133 = por %p131, %p132
      %p134 = scmp.ne.s32.totalorder %s123, %s126
      %p135 = scmp.eq.s32.totalorder %s28, 1
      %p136 = por %p134, %p135
      %p137 = scmp.ne.s32.totalorder %s126, %s127
      %p138 = scmp.eq.s32.totalorder %s28, 0
      %p139 = por %p137, %p138
      %p140 = scmp.ne.s32.totalorder %s126, %s127
      %p141 = scmp.eq.s32.totalorder %s29, 1
      %p142 = por %p140, %p141
      %p144 = scmp.ne.s32.totalorder %s127, %s143
      %p145 = scmp.eq.s32.totalorder %s29, 0
      %p146 = por %p144, %p145
      %s147 = ssub.s32 %s30, %s56
      %s148 = ssub.s32 %s31, %s52
      %s149 = sor.u32 %s147, %s148
      %s150 = ssub.s32 %s32, %s48
      %s151 = sor.u32 %s149, %s150
      %p152 = scmp.eq.s32.totalorder %s151, 0
      %s154 = sadd.s32 %s153, 1
      %s155 = scalar_select %p152, %s153, %s154
      %p158 = pneg %p152
      %p159 = scmp.eq.s32.totalorder %s23, 1
      %p160 = por %p158, %p159
      %p161 = scmp.ne.s32.totalorder %s153, %s156
      %p162 = scmp.eq.s32.totalorder %s23, 0
      %p163 = por %p161, %p162
      %p164 = scmp.ne.s32.totalorder %s153, %s156
      %p165 = scmp.eq.s32.totalorder %s28, 1
      %p166 = por %p164, %p165
      %p167 = scmp.ne.s32.totalorder %s156, %s157
      %p168 = scmp.eq.s32.totalorder %s28, 0
      %p169 = por %p167, %p168
      %p170 = scmp.ne.s32.totalorder %s156, %s157
      %p171 = scmp.eq.s32.totalorder %s29, 1
      %p172 = por %p170, %p171
      %p174 = scmp.ne.s32.totalorder %s157, %s173
      %p175 = scmp.eq.s32.totalorder %s29, 0
      %p176 = por %p174, %p175
      %p177 = scmp.le.s32.totalorder 1, %s23
      %p178 = scmp.lt.s32.totalorder %s23, 3
      %p179 = pnand %p177, %p178
      %p180 = pneg %p179
      // Predicated region
      $region9: #{tpu_custom_call.1} parent=5 // pred_check
        _
      $region10: #{tpu_custom_call.1} parent=5 // pred_check_branch
        %182 = sbr.rel (%p179) target = $region12
      $region11: #{tpu_custom_call.1} parent=5 // pred_region
        %s183 = ssub.s32 %s23, 1
      $region12: #{tpu_custom_call.1} parent=5 // pred_fallthru
        _
      %p184 = scmp.lt.s32.totalorder %s23, 2
      // Predicated region
      $region13: #{tpu_custom_call.1} parent=5 // pred_check
        %p185 = pneg %p184
      $region14: #{tpu_custom_call.1} parent=5 // pred_check_branch
        %187 = sbr.rel (%p185) target = $region16
      $region15: #{tpu_custom_call.1} parent=5 // pred_region
        // Predicated region
        $region17: #{tpu_custom_call.1} parent=15 // pred_check
          %p188 = pneg %p73
        $region18: #{tpu_custom_call.1} parent=15 // pred_check_branch
          %190 = sbr.rel (%p188) target = $region20
        $region19: #{tpu_custom_call.1} parent=15 // pred_region
          %s191 = sand.u32 %s63, 1
          %s192 = scalar_lea.sflag [#allocation8], %s191
          %s193 = sand.u32 %s63, 1
          %s194 = smul.addr %s193, 32
          %s195 = scalar_lea.vmem [#allocation7], %s194
          %s196 = smul.u32 4, %s31
          %s198 = ssub.s32 512, 512
          %199 = vsyncadd %s192, %s198
          %s200 = sadd.s32 %s32, %s196
          %s201 = smul.addr %s30, 4
          %s202 = sadd.s32 %s200, %s201
          %s203 = smul.addr %s202, 128
          %s204 = scalar_lea.hbm %s1, %s203
          %s205 = sshll.u32 %s195, 4
          %s206 = int_to_ptr.vmem [resolvable:$true] %s205
          %211 = dma.hbm_to_vmem [thread:$0]  %s204, 512, %s206, %s192, 128, 128, 8
        $region20: #{tpu_custom_call.1} parent=15 // pred_fallthru
          _
        // Predicated region
        $region21: #{tpu_custom_call.1} parent=15 // pred_check
          %p212 = pneg %p103
        $region22: #{tpu_custom_call.1} parent=15 // pred_check_branch
          %214 = sbr.rel (%p212) target = $region24
        $region23: #{tpu_custom_call.1} parent=15 // pred_region
          %s215 = sand.u32 %s23, 1
          %s216 = scalar_lea.sflag [#allocation11], %s215
          %s217 = sand.u32 %s93, 1
          %s218 = smul.addr %s217, 32
          %s219 = scalar_lea.vmem [#allocation10], %s218
          %s220 = smul.u32 4, %s31
          %s222 = ssub.s32 512, 512
          %223 = vsyncadd %s216, %s222
          %s224 = sadd.s32 %s33, %s220
          %s225 = smul.addr %s30, 4
          %s226 = sadd.s32 %s224, %s225
          %s227 = smul.addr %s226, 128
          %s228 = scalar_lea.hbm %s2, %s227
          %s229 = sshll.u32 %s219, 4
          %s230 = int_to_ptr.vmem [resolvable:$true] %s229
          %235 = dma.hbm_to_vmem [thread:$0]  %s228, 512, %s230, %s216, 128, 128, 8
        $region24: #{tpu_custom_call.1} parent=15 // pred_fallthru
          _
        // Predicated region
        $region25: #{tpu_custom_call.1} parent=15 // pred_check
          %p236 = pneg %p133
        $region26: #{tpu_custom_call.1} parent=15 // pred_check_branch
          %238 = sbr.rel (%p236) target = $region28
        $region27: #{tpu_custom_call.1} parent=15 // pred_region
          %s239 = sand.u32 %s23, 1
          %s240 = scalar_lea.sflag [#allocation11], %s239
          %s241 = sand.u32 %s123, 1
          %s242 = smul.addr %s241, 32
          %s243 = scalar_lea.vmem [#allocation12], %s242
          %s244 = smul.u32 4, %s31
          %s246 = ssub.s32 512, 512
          %247 = vsyncadd %s240, %s246
          %s248 = sadd.s32 %s33, %s244
          %s249 = smul.addr %s30, 4
          %s250 = sadd.s32 %s248, %s249
          %s251 = smul.addr %s250, 128
          %s252 = scalar_lea.hbm %s3, %s251
          %s253 = sshll.u32 %s243, 4
          %s254 = int_to_ptr.vmem [resolvable:$true] %s253
          %259 = dma.hbm_to_vmem [thread:$0]  %s252, 512, %s254, %s240, 128, 128, 8
        $region28: #{tpu_custom_call.1} parent=15 // pred_fallthru
          _
      $region16: #{tpu_custom_call.1} parent=5 // pred_fallthru
        _
      %p260 = scmp.le.s32.totalorder 1, %s23
      %p261 = scmp.lt.s32.totalorder %s23, 3
      %p262 = pnand %p260, %p261
      %p263 = pneg %p262
      // Predicated region
      $region29: #{tpu_custom_call.1} parent=5 // pred_check
        _
      $region30: #{tpu_custom_call.1} parent=5 // pred_check_branch
        %265 = sbr.rel (%p262) target = $region32
      $region31: #{tpu_custom_call.1} parent=5 // pred_region
        %s266 = ssub.s32 %s23, 1
        %s267 = sand.u32 %s66, 1
        %s268 = scalar_lea.sflag [#allocation8], %s267
        %s269 = sand.u32 %s66, 1
        %s270 = smul.addr %s269, 32
        %s271 = scalar_lea.vmem [#allocation7], %s270
        // Predicated region
        $region33: #{tpu_custom_call.1} parent=31 // pred_check
          %p272 = pneg %p79
        $region34: #{tpu_custom_call.1} parent=31 // pred_check_branch
          %274 = sbr.rel (%p272) target = $region36
        $region35: #{tpu_custom_call.1} parent=31 // pred_region
          %275 = dma.done %s268, 512
        $region36: #{tpu_custom_call.1} parent=31 // pred_fallthru
          _
        %s276 = sand.u32 %s28, 1
        %s277 = scalar_lea.sflag [#allocation11], %s276
        %s278 = sand.u32 %s96, 1
        %s279 = smul.addr %s278, 32
        %s280 = scalar_lea.vmem [#allocation10], %s279
        // Predicated region
        $region37: #{tpu_custom_call.1} parent=31 // pred_check
          %p281 = pneg %p109
        $region38: #{tpu_custom_call.1} parent=31 // pred_check_branch
          %283 = sbr.rel (%p281) target = $region40
        $region39: #{tpu_custom_call.1} parent=31 // pred_region
          %284 = dma.done %s277, 512
        $region40: #{tpu_custom_call.1} parent=31 // pred_fallthru
          _
        %s285 = sand.u32 %s28, 1
        %s286 = scalar_lea.sflag [#allocation11], %s285
        %s287 = sand.u32 %s126, 1
        %s288 = smul.addr %s287, 32
        %s289 = scalar_lea.vmem [#allocation12], %s288
        // Predicated region
        $region41: #{tpu_custom_call.1} parent=31 // pred_check
          %p290 = pneg %p139
        $region42: #{tpu_custom_call.1} parent=31 // pred_check_branch
          %292 = sbr.rel (%p290) target = $region44
        $region43: #{tpu_custom_call.1} parent=31 // pred_region
          %293 = dma.done %s286, 512
        $region44: #{tpu_custom_call.1} parent=31 // pred_fallthru
          _
        %s294 = sand.u32 %s66, 1
        %s295 = scalar_lea.sflag [#allocation8], %s294
        %s296 = sand.u32 %s66, 1
        %s297 = smul.addr %s296, 32
        %s298 = scalar_lea.vmem [#allocation7], %s297
        %p299 = pneg %p79
        %p300 = pneg %p76
        %s301 = sand.u32 %s28, 1
        %s302 = scalar_lea.sflag [#allocation11], %s301
        %s303 = sand.u32 %s96, 1
        %s304 = smul.addr %s303, 32
        %s305 = scalar_lea.vmem [#allocation10], %s304
        %p306 = pneg %p109
        %p307 = pneg %p106
        %s308 = sand.u32 %s28, 1
        %s309 = scalar_lea.sflag [#allocation11], %s308
        %s310 = sand.u32 %s126, 1
        %s311 = smul.addr %s310, 32
        %s312 = scalar_lea.vmem [#allocation12], %s311
        %p313 = pneg %p139
        %p314 = pneg %p136
        %p315 = pneg %p169
        %p316 = pneg %p166
        %s317 = sand.u32 %s156, 1
        %s318 = scalar_lea.sflag [#allocation9], %s317
        %s319 = sand.u32 %s156, 1
        %s320 = smul.addr %s319, 32
        %s321 = scalar_lea.vmem [#allocation13], %s320
        %s322 = smul.u32 4, %s35
        %s323 = smul.u32 4, %s35
        %s324 = smul.u32 4, %s35
        %s325 = smul.u32 4, %s35
        %p326 = scmp.eq.s32.totalorder %s37, 0
        // Predicated region
        $region45: #{tpu_custom_call.1} parent=31 // pred_check
          %p327 = pneg %p326
        $region46: #{tpu_custom_call.1} parent=31 // pred_check_branch
          %329 = sbr.rel (%p327) target = $region48
        $region47: #{tpu_custom_call.1} parent=31 // pred_region
          %vm330 = vcmask 7168
          %331 = vst.msk [vmem:[#allocation2] sm:$0xff] %vm330, -inf
          %332 = vst.msk [vmem:[#allocation2 + $0x8] sm:$0xff] %vm330, -inf
          %333 = vst.msk [vmem:[#allocation2 + $0x10] sm:$0xff] %vm330, -inf
          %334 = vst.msk [vmem:[#allocation2 + $0x18] sm:$0xff] %vm330, -inf
          %335 = vst.msk [vmem:[#allocation3] sm:$0xff] %vm330, 0.0
          %336 = vst.msk [vmem:[#allocation3 + $0x8] sm:$0xff] %vm330, 0.0
          %337 = vst.msk [vmem:[#allocation3 + $0x10] sm:$0xff] %vm330, 0.0
          %338 = vst.msk [vmem:[#allocation3 + $0x18] sm:$0xff] %vm330, 0.0
          %vm339 = vcmask 64512
          %340 = vst.msk [vmem:[#allocation4] sm:$0xff] %vm339, 0.0
          %341 = vst.msk [vmem:[#allocation4 + $0x8] sm:$0xff] %vm339, 0.0
          %342 = vst.msk [vmem:[#allocation4 + $0x10] sm:$0xff] %vm339, 0.0
          %343 = vst.msk [vmem:[#allocation4 + $0x18] sm:$0xff] %vm339, 0.0
        $region48: #{tpu_custom_call.1} parent=31 // pred_fallthru
          _
        %v344 = vld [vmem:[%s271] sm:$0xff]
        %v345 = vld [vmem:[%s271 + $0x8] sm:$0xff]
        %v346 = vld [vmem:[%s271 + $0x10] sm:$0xff]
        %v347 = vld [vmem:[%s271 + $0x18] sm:$0xff]
        %v348 = vmul.f32 %v344, 0.35355338
        %v349 = vmul.f32 %v345, 0.35355338
        %v350 = vmul.f32 %v346, 0.35355338
        %v351 = vmul.f32 %v347, 0.35355338
        %v352 = vld [vmem:[%s280] sm:$0xff]
        %v353 = vld [vmem:[%s280 + $0x8] sm:$0xff]
        %v354 = vld [vmem:[%s280 + $0x10] sm:$0xff]
        %v355 = vld [vmem:[%s280 + $0x18] sm:$0xff]
        %v356 = vld [vmem:[%s289] sm:$0xff]
        %v357 = vld [vmem:[%s289 + $0x8] sm:$0xff]
        %v358 = vld [vmem:[%s289 + $0x10] sm:$0xff]
        %v359 = vld [vmem:[%s289 + $0x18] sm:$0xff]
        %vm360 = vcmask 64512
        %v362 = vsel %vm360, %v348, 0
        %v365 = vsel %vm360, %v352, 0
        %367 = vmatprep.subr.mxu0 0.0
        %368 = vmatpush1.xpose.msra.mxu0 %v365
        %369 = vmatprep.subr.mxu0 0.0
        %370 = vmatpush1.xpose.msra.mxu0 0.0
        %371 = vmatprep.subr.mxu0 0.0
        %372 = vmatpush1.xpose.msra.mxu0 0.0
        %373 = vmatprep.subr.mxu0 0.0
        %374 = vmatpush1.xpose.msra.mxu0 0.0
        %375 = vmatprep.subr.mxu0 0.0
        %376 = vmatpush1.xpose.msra.mxu0 0.0
        %377 = vmatprep.subr.mxu0 0.0
        %378 = vmatpush1.xpose.msra.mxu0 0.0
        %379 = vmatprep.subr.mxu0 0.0
        %380 = vmatpush1.xpose.msra.mxu0 0.0
        %381 = vmatprep.subr.mxu0 0.0
        %382 = vmatpush1.xpose.msra.mxu0 0.0
        %383 = vmatprep.subr.mxu0 0.0
        %384 = vmatpush1.xpose.msra.mxu0 0.0
        %385 = vmatprep.subr.mxu0 0.0
        %386 = vmatpush1.xpose.msra.mxu0 0.0
        %387 = vmatprep.subr.mxu0 0.0
        %388 = vmatpush1.xpose.msra.mxu0 0.0
        %389 = vmatprep.subr.mxu0 0.0
        %390 = vmatpush1.xpose.msra.mxu0 0.0
        %391 = vmatprep.subr.mxu0 0.0
        %392 = vmatpush1.xpose.msra.mxu0 0.0
        %393 = vmatprep.subr.mxu0 0.0
        %394 = vmatpush1.xpose.msra.mxu0 0.0
        %395 = vmatprep.subr.mxu0 0.0
        %396 = vmatpush1.xpose.msra.mxu0 0.0
        %397 = vmatprep.subr.mxu0 0.0
        %398 = vmatpush1.xpose.msra.mxu0 0.0
        %399 = vmatprep.subr.mxu0 0.0
        %400 = vmatpush1.xpose.msra.mxu0 0.0
        %401 = vmatprep.subr.mxu0 0.0
        %402 = vmatpush1.xpose.msra.mxu0 0.0
        %403 = vmatprep.subr.mxu0 0.0
        %404 = vmatpush1.xpose.msra.mxu0 0.0
        %405 = vmatprep.subr.mxu0 0.0
        %406 = vmatpush1.xpose.msra.mxu0 0.0
        %407 = vmatprep.subr.mxu0 0.0
        %408 = vmatpush1.xpose.msra.mxu0 0.0
        %409 = vmatprep.subr.mxu0 0.0
        %410 = vmatpush1.xpose.msra.mxu0 0.0
        %411 = vmatprep.subr.mxu0 0.0
        %412 = vmatpush1.xpose.msra.mxu0 0.0
        %413 = vmatprep.subr.mxu0 0.0
        %414 = vmatpush1.xpose.msra.mxu0 0.0
        %415 = vmatprep.subr.mxu0 0.0
        %416 = vmatpush1.xpose.msra.mxu0 0.0
        %417 = vmatprep.subr.mxu0 0.0
        %418 = vmatpush1.xpose.msra.mxu0 0.0
        %419 = vmatprep.subr.mxu0 0.0
        %420 = vmatpush1.xpose.msra.mxu0 0.0
        %421 = vmatprep.subr.mxu0 0.0
        %422 = vmatpush1.xpose.msra.mxu0 0.0
        %423 = vmatprep.subr.mxu0 0.0
        %424 = vmatpush1.xpose.msra.mxu0 0.0
        %425 = vmatprep.subr.mxu0 0.0
        %426 = vmatpush1.xpose.msra.mxu0 0.0
        %427 = vmatprep.subr.mxu0 0.0
        %428 = vmatpush1.xpose.msra.mxu0 0.0
        %429 = vmatprep.subr.mxu0 0.0
        %430 = vmatpush1.xpose.msra.mxu0 0.0
        %431 = vmatprep.mubr.f32.mxu0 0.0
        %432 = vmatmul.mubr.f32.gmra.mrb[0].mxu0 %v362
        %v433 = vpop.f32.mrb[0].mxu0
        %v434 = vadd.f32 0.0, %v433
        %v435 = vpop.f32.mrb[0].mxu0
        %436 = vdwg.mxu0
        %v438 = vsel %vm360, %v349, 0
        %v441 = vsel %vm360, %v353, 0
        %443 = vmatprep.subr.mxu0 0.0
        %444 = vmatpush1.xpose.msra.mxu0 %v441
        %445 = vmatprep.subr.mxu0 0.0
        %446 = vmatpush1.xpose.msra.mxu0 0.0
        %447 = vmatprep.subr.mxu0 0.0
        %448 = vmatpush1.xpose.msra.mxu0 0.0
        %449 = vmatprep.subr.mxu0 0.0
        %450 = vmatpush1.xpose.msra.mxu0 0.0
        %451 = vmatprep.subr.mxu0 0.0
        %452 = vmatpush1.xpose.msra.mxu0 0.0
        %453 = vmatprep.subr.mxu0 0.0
        %454 = vmatpush1.xpose.msra.mxu0 0.0
        %455 = vmatprep.subr.mxu0 0.0
        %456 = vmatpush1.xpose.msra.mxu0 0.0
        %457 = vmatprep.subr.mxu0 0.0
        %458 = vmatpush1.xpose.msra.mxu0 0.0
        %459 = vmatprep.subr.mxu0 0.0
        %460 = vmatpush1.xpose.msra.mxu0 0.0
        %461 = vmatprep.subr.mxu0 0.0
        %462 = vmatpush1.xpose.msra.mxu0 0.0
        %463 = vmatprep.subr.mxu0 0.0
        %464 = vmatpush1.xpose.msra.mxu0 0.0
        %465 = vmatprep.subr.mxu0 0.0
        %466 = vmatpush1.xpose.msra.mxu0 0.0
        %467 = vmatprep.subr.mxu0 0.0
        %468 = vmatpush1.xpose.msra.mxu0 0.0
        %469 = vmatprep.subr.mxu0 0.0
        %470 = vmatpush1.xpose.msra.mxu0 0.0
        %471 = vmatprep.subr.mxu0 0.0
        %472 = vmatpush1.xpose.msra.mxu0 0.0
        %473 = vmatprep.subr.mxu0 0.0
        %474 = vmatpush1.xpose.msra.mxu0 0.0
        %475 = vmatprep.subr.mxu0 0.0
        %476 = vmatpush1.xpose.msra.mxu0 0.0
        %477 = vmatprep.subr.mxu0 0.0
        %478 = vmatpush1.xpose.msra.mxu0 0.0
        %479 = vmatprep.subr.mxu0 0.0
        %480 = vmatpush1.xpose.msra.mxu0 0.0
        %481 = vmatprep.subr.mxu0 0.0
        %482 = vmatpush1.xpose.msra.mxu0 0.0
        %483 = vmatprep.subr.mxu0 0.0
        %484 = vmatpush1.xpose.msra.mxu0 0.0
        %485 = vmatprep.subr.mxu0 0.0
        %486 = vmatpush1.xpose.msra.mxu0 0.0
        %487 = vmatprep.subr.mxu0 0.0
        %488 = vmatpush1.xpose.msra.mxu0 0.0
        %489 = vmatprep.subr.mxu0 0.0
        %490 = vmatpush1.xpose.msra.mxu0 0.0
        %491 = vmatprep.subr.mxu0 0.0
        %492 = vmatpush1.xpose.msra.mxu0 0.0
        %493 = vmatprep.subr.mxu0 0.0
        %494 = vmatpush1.xpose.msra.mxu0 0.0
        %495 = vmatprep.subr.mxu0 0.0
        %496 = vmatpush1.xpose.msra.mxu0 0.0
        %497 = vmatprep.subr.mxu0 0.0
        %498 = vmatpush1.xpose.msra.mxu0 0.0
        %499 = vmatprep.subr.mxu0 0.0
        %500 = vmatpush1.xpose.msra.mxu0 0.0
        %501 = vmatprep.subr.mxu0 0.0
        %502 = vmatpush1.xpose.msra.mxu0 0.0
        %503 = vmatprep.subr.mxu0 0.0
        %504 = vmatpush1.xpose.msra.mxu0 0.0
        %505 = vmatprep.subr.mxu0 0.0
        %506 = vmatpush1.xpose.msra.mxu0 0.0
        %507 = vmatprep.mubr.f32.mxu0 0.0
        %508 = vmatmul.mubr.f32.gmra.mrb[0].mxu0 %v438
        %v509 = vpop.f32.mrb[0].mxu0
        %v510 = vadd.f32 0.0, %v509
        %v511 = vpop.f32.mrb[0].mxu0
        %512 = vdwg.mxu0
        %v514 = vsel %vm360, %v350, 0
        %v517 = vsel %vm360, %v354, 0
        %519 = vmatprep.subr.mxu0 0.0
        %520 = vmatpush1.xpose.msra.mxu0 %v517
        %521 = vmatprep.subr.mxu0 0.0
        %522 = vmatpush1.xpose.msra.mxu0 0.0
        %523 = vmatprep.subr.mxu0 0.0
        %524 = vmatpush1.xpose.msra.mxu0 0.0
        %525 = vmatprep.subr.mxu0 0.0
        %526 = vmatpush1.xpose.msra.mxu0 0.0
        %527 = vmatprep.subr.mxu0 0.0
        %528 = vmatpush1.xpose.msra.mxu0 0.0
        %529 = vmatprep.subr.mxu0 0.0
        %530 = vmatpush1.xpose.msra.mxu0 0.0
        %531 = vmatprep.subr.mxu0 0.0
        %532 = vmatpush1.xpose.msra.mxu0 0.0
        %533 = vmatprep.subr.mxu0 0.0
        %534 = vmatpush1.xpose.msra.mxu0 0.0
        %535 = vmatprep.subr.mxu0 0.0
        %536 = vmatpush1.xpose.msra.mxu0 0.0
        %537 = vmatprep.subr.mxu0 0.0
        %538 = vmatpush1.xpose.msra.mxu0 0.0
        %539 = vmatprep.subr.mxu0 0.0
        %540 = vmatpush1.xpose.msra.mxu0 0.0
        %541 = vmatprep.subr.mxu0 0.0
        %542 = vmatpush1.xpose.msra.mxu0 0.0
        %543 = vmatprep.subr.mxu0 0.0
        %544 = vmatpush1.xpose.msra.mxu0 0.0
        %545 = vmatprep.subr.mxu0 0.0
        %546 = vmatpush1.xpose.msra.mxu0 0.0
        %547 = vmatprep.subr.mxu0 0.0
        %548 = vmatpush1.xpose.msra.mxu0 0.0
        %549 = vmatprep.subr.mxu0 0.0
        %550 = vmatpush1.xpose.msra.mxu0 0.0
        %551 = vmatprep.subr.mxu0 0.0
        %552 = vmatpush1.xpose.msra.mxu0 0.0
        %553 = vmatprep.subr.mxu0 0.0
        %554 = vmatpush1.xpose.msra.mxu0 0.0
        %555 = vmatprep.subr.mxu0 0.0
        %556 = vmatpush1.xpose.msra.mxu0 0.0
        %557 = vmatprep.subr.mxu0 0.0
        %558 = vmatpush1.xpose.msra.mxu0 0.0
        %559 = vmatprep.subr.mxu0 0.0
        %560 = vmatpush1.xpose.msra.mxu0 0.0
        %561 = vmatprep.subr.mxu0 0.0
        %562 = vmatpush1.xpose.msra.mxu0 0.0
        %563 = vmatprep.subr.mxu0 0.0
        %564 = vmatpush1.xpose.msra.mxu0 0.0
        %565 = vmatprep.subr.mxu0 0.0
        %566 = vmatpush1.xpose.msra.mxu0 0.0
        %567 = vmatprep.subr.mxu0 0.0
        %568 = vmatpush1.xpose.msra.mxu0 0.0
        %569 = vmatprep.subr.mxu0 0.0
        %570 = vmatpush1.xpose.msra.mxu0 0.0
        %571 = vmatprep.subr.mxu0 0.0
        %572 = vmatpush1.xpose.msra.mxu0 0.0
        %573 = vmatprep.subr.mxu0 0.0
        %574 = vmatpush1.xpose.msra.mxu0 0.0
        %575 = vmatprep.subr.mxu0 0.0
        %576 = vmatpush1.xpose.msra.mxu0 0.0
        %577 = vmatprep.subr.mxu0 0.0
        %578 = vmatpush1.xpose.msra.mxu0 0.0
        %579 = vmatprep.subr.mxu0 0.0
        %580 = vmatpush1.xpose.msra.mxu0 0.0
        %581 = vmatprep.subr.mxu0 0.0
        %582 = vmatpush1.xpose.msra.mxu0 0.0
        %583 = vmatprep.mubr.f32.mxu0 0.0
        %584 = vmatmul.mubr.f32.gmra.mrb[0].mxu0 %v514
        %v585 = vpop.f32.mrb[0].mxu0
        %v586 = vadd.f32 0.0, %v585
        %v587 = vpop.f32.mrb[0].mxu0
        %588 = vdwg.mxu0
        %v590 = vsel %vm360, %v351, 0
        %v593 = vsel %vm360, %v355, 0
        %595 = vmatprep.subr.mxu0 0.0
        %596 = vmatpush1.xpose.msra.mxu0 %v593
        %597 = vmatprep.subr.mxu0 0.0
        %598 = vmatpush1.xpose.msra.mxu0 0.0
        %599 = vmatprep.subr.mxu0 0.0
        %600 = vmatpush1.xpose.msra.mxu0 0.0
        %601 = vmatprep.subr.mxu0 0.0
        %602 = vmatpush1.xpose.msra.mxu0 0.0
        %603 = vmatprep.subr.mxu0 0.0
        %604 = vmatpush1.xpose.msra.mxu0 0.0
        %605 = vmatprep.subr.mxu0 0.0
        %606 = vmatpush1.xpose.msra.mxu0 0.0
        %607 = vmatprep.subr.mxu0 0.0
        %608 = vmatpush1.xpose.msra.mxu0 0.0
        %609 = vmatprep.subr.mxu0 0.0
        %610 = vmatpush1.xpose.msra.mxu0 0.0
        %611 = vmatprep.subr.mxu0 0.0
        %612 = vmatpush1.xpose.msra.mxu0 0.0
        %613 = vmatprep.subr.mxu0 0.0
        %614 = vmatpush1.xpose.msra.mxu0 0.0
        %615 = vmatprep.subr.mxu0 0.0
        %616 = vmatpush1.xpose.msra.mxu0 0.0
        %617 = vmatprep.subr.mxu0 0.0
        %618 = vmatpush1.xpose.msra.mxu0 0.0
        %619 = vmatprep.subr.mxu0 0.0
        %620 = vmatpush1.xpose.msra.mxu0 0.0
        %621 = vmatprep.subr.mxu0 0.0
        %622 = vmatpush1.xpose.msra.mxu0 0.0
        %623 = vmatprep.subr.mxu0 0.0
        %624 = vmatpush1.xpose.msra.mxu0 0.0
        %625 = vmatprep.subr.mxu0 0.0
        %626 = vmatpush1.xpose.msra.mxu0 0.0
        %627 = vmatprep.subr.mxu0 0.0
        %628 = vmatpush1.xpose.msra.mxu0 0.0
        %629 = vmatprep.subr.mxu0 0.0
        %630 = vmatpush1.xpose.msra.mxu0 0.0
        %631 = vmatprep.subr.mxu0 0.0
        %632 = vmatpush1.xpose.msra.mxu0 0.0
        %633 = vmatprep.subr.mxu0 0.0
        %634 = vmatpush1.xpose.msra.mxu0 0.0
        %635 = vmatprep.subr.mxu0 0.0
        %636 = vmatpush1.xpose.msra.mxu0 0.0
        %637 = vmatprep.subr.mxu0 0.0
        %638 = vmatpush1.xpose.msra.mxu0 0.0
        %639 = vmatprep.subr.mxu0 0.0
        %640 = vmatpush1.xpose.msra.mxu0 0.0
        %641 = vmatprep.subr.mxu0 0.0
        %642 = vmatpush1.xpose.msra.mxu0 0.0
        %643 = vmatprep.subr.mxu0 0.0
        %644 = vmatpush1.xpose.msra.mxu0 0.0
        %645 = vmatprep.subr.mxu0 0.0
        %646 = vmatpush1.xpose.msra.mxu0 0.0
        %647 = vmatprep.subr.mxu0 0.0
        %648 = vmatpush1.xpose.msra.mxu0 0.0
        %649 = vmatprep.subr.mxu0 0.0
        %650 = vmatpush1.xpose.msra.mxu0 0.0
        %651 = vmatprep.subr.mxu0 0.0
        %652 = vmatpush1.xpose.msra.mxu0 0.0
        %653 = vmatprep.subr.mxu0 0.0
        %654 = vmatpush1.xpose.msra.mxu0 0.0
        %655 = vmatprep.subr.mxu0 0.0
        %656 = vmatpush1.xpose.msra.mxu0 0.0
        %657 = vmatprep.subr.mxu0 0.0
        %658 = vmatpush1.xpose.msra.mxu0 0.0
        %659 = vmatprep.mubr.f32.mxu0 0.0
        %660 = vmatmul.mubr.f32.gmra.mrb[0].mxu0 %v590
        %v661 = vpop.f32.mrb[0].mxu0
        %v662 = vadd.f32 0.0, %v661
        %v663 = vpop.f32.mrb[0].mxu0
        %664 = vdwg.mxu0
        %s665 = sld [smem:[#allocation6 + %s34]]
        %s666 = smul.u32 %s37, 8
        %v667 = vlaneseq
        %v668 = vand.u32 %v667, 127
        %v669 = vstv %s666
        %v670 = vadd.s32 %v669, %v668
        %v671 = vstv %s665
        %vm672 = vcmp.ge.s32.totalorder %v670, %v671
        %v673 = vsel %vm672, 1, 0
        %vm674 = vcmp.eq.s32.totalorder %v673, 1
        %v675 = vsel %vm674, -1e+09, %v434
        %v676 = vsel %vm674, -1e+09, %v510
        %v677 = vsel %vm674, -1e+09, %v586
        %v678 = vsel %vm674, -1e+09, %v662
        %v679 = vld [vmem:[#allocation2] sm:$0xff]
        %v680 = vld [vmem:[#allocation2 + $0x8] sm:$0xff]
        %v681 = vld [vmem:[#allocation2 + $0x10] sm:$0xff]
        %v682 = vld [vmem:[#allocation2 + $0x18] sm:$0xff]
        %v683 = vsel %vm360, %v675, -inf
        %684 = vmax.xlane.f32.xlu0 %v683
        %v685 = vpop.xlane.xlu0 %684
        %v686 = vsel %vm360, %v676, -inf
        %687 = vmax.xlane.f32.xlu0 %v686
        %v688 = vpop.xlane.xlu0 %687
        %v689 = vsel %vm360, %v677, -inf
        %690 = vmax.xlane.f32.xlu0 %v689
        %v691 = vpop.xlane.xlu0 %690
        %v692 = vsel %vm360, %v678, -inf
        %693 = vmax.xlane.f32.xlu0 %v692
        %v694 = vpop.xlane.xlu0 %693
        %v695 = vmax.f32 %v679, %v685
        %v696 = vmax.f32 %v680, %v688
        %v697 = vmax.f32 %v681, %v691
        %v698 = vmax.f32 %v682, %v694
        %v699 = vsub.f32 %v679, %v695
        %v700 = vsub.f32 %v680, %v696
        %v701 = vsub.f32 %v681, %v697
        %v702 = vsub.f32 %v682, %v698
        %v703 = vmul.f32 %v699, 1.442695
        %v704 = vpow.pop %v703
        %v705 = vmul.f32 %v700, 1.442695
        %v706 = vpow.pop %v705
        %v707 = vmul.f32 %v701, 1.442695
        %v708 = vpow.pop %v707
        %v709 = vmul.f32 %v702, 1.442695
        %v710 = vpow.pop %v709
        %712 = vset.pattern.permute.xlu0 0
        %713 = vperm.xlu0 %712, %v695
        %v714 = vpop.permute.xlu0 %713
        %717 = vset.pattern.permute.xlu0 0
        %718 = vperm.xlu0 %717, %v696
        %v719 = vpop.permute.xlu0 %718
        %722 = vset.pattern.permute.xlu0 0
        %723 = vperm.xlu0 %722, %v697
        %v724 = vpop.permute.xlu0 %723
        %727 = vset.pattern.permute.xlu0 0
        %728 = vperm.xlu0 %727, %v698
        %v729 = vpop.permute.xlu0 %728
        %v731 = vsub.f32 %v675, %v714
        %v732 = vsub.f32 %v676, %v719
        %v733 = vsub.f32 %v677, %v724
        %v734 = vsub.f32 %v678, %v729
        %v735 = vmul.f32 %v731, 1.442695
        %v736 = vpow.pop %v735
        %v737 = vmul.f32 %v732, 1.442695
        %v738 = vpow.pop %v737
        %v739 = vmul.f32 %v733, 1.442695
        %v740 = vpow.pop %v739
        %v741 = vmul.f32 %v734, 1.442695
        %v742 = vpow.pop %v741
        %v743 = vld [vmem:[#allocation3] sm:$0xff]
        %v744 = vld [vmem:[#allocation3 + $0x8] sm:$0xff]
        %v745 = vld [vmem:[#allocation3 + $0x10] sm:$0xff]
        %v746 = vld [vmem:[#allocation3 + $0x18] sm:$0xff]
        %v747 = vmul.f32 %v704, %v743
        %v748 = vmul.f32 %v706, %v744
        %v749 = vmul.f32 %v708, %v745
        %v750 = vmul.f32 %v710, %v746
        %v751 = vsel %vm360, %v736, 0.0
        %752 = vadd.xlane.f32.xlu0 %v751
        %v753 = vpop.xlane.xlu0 %752
        %v754 = vsel %vm360, %v738, 0.0
        %755 = vadd.xlane.f32.xlu0 %v754
        %v756 = vpop.xlane.xlu0 %755
        %v757 = vsel %vm360, %v740, 0.0
        %758 = vadd.xlane.f32.xlu0 %v757
        %v759 = vpop.xlane.xlu0 %758
        %v760 = vsel %vm360, %v742, 0.0
        %761 = vadd.xlane.f32.xlu0 %v760
        %v762 = vpop.xlane.xlu0 %761
        %v763 = vadd.f32 %v747, %v753
        %v764 = vadd.f32 %v748, %v756
        %v765 = vadd.f32 %v749, %v759
        %v766 = vadd.f32 %v750, %v762
        %vm767 = vcmask 7168
        %768 = vst.msk [vmem:[#allocation3] sm:$0xff] %vm767, %v763
        %769 = vst.msk [vmem:[#allocation3 + $0x8] sm:$0xff] %vm767, %v764
        %770 = vst.msk [vmem:[#allocation3 + $0x10] sm:$0xff] %vm767, %v765
        %771 = vst.msk [vmem:[#allocation3 + $0x18] sm:$0xff] %vm767, %v766
        %v772 = vld [vmem:[#allocation4] sm:$0xff]
        %v773 = vld [vmem:[#allocation4 + $0x8] sm:$0xff]
        %v774 = vld [vmem:[#allocation4 + $0x10] sm:$0xff]
        %v775 = vld [vmem:[#allocation4 + $0x18] sm:$0xff]
        %777 = vset.pattern.permute.xlu0 0
        %778 = vperm.xlu0 %777, %v704
        %v779 = vpop.permute.xlu0 %778
        %782 = vset.pattern.permute.xlu0 0
        %783 = vperm.xlu0 %782, %v706
        %v784 = vpop.permute.xlu0 %783
        %787 = vset.pattern.permute.xlu0 0
        %788 = vperm.xlu0 %787, %v708
        %v789 = vpop.permute.xlu0 %788
        %792 = vset.pattern.permute.xlu0 0
        %793 = vperm.xlu0 %792, %v710
        %v794 = vpop.permute.xlu0 %793
        %v796 = vmul.f32 %v779, %v772
        %v797 = vmul.f32 %v784, %v773
        %v798 = vmul.f32 %v789, %v774
        %v799 = vmul.f32 %v794, %v775
        %v801 = vsel %vm360, %v736, 0
        %803 = vmatprep.subr.mxu0 0.0
        %804 = vmatpush1.msra.mxu0 %v356
        %805 = vmatprep.subr.mxu0 0.0
        %806 = vmatpush1.msra.mxu0 0.0
        %807 = vmatprep.subr.mxu0 0.0
        %808 = vmatpush1.msra.mxu0 0.0
        %809 = vmatprep.subr.mxu0 0.0
        %810 = vmatpush1.msra.mxu0 0.0
        %811 = vmatprep.subr.mxu0 0.0
        %812 = vmatpush1.msra.mxu0 0.0
        %813 = vmatprep.subr.mxu0 0.0
        %814 = vmatpush1.msra.mxu0 0.0
        %815 = vmatprep.subr.mxu0 0.0
        %816 = vmatpush1.msra.mxu0 0.0
        %817 = vmatprep.subr.mxu0 0.0
        %818 = vmatpush1.msra.mxu0 0.0
        %819 = vmatprep.subr.mxu0 0.0
        %820 = vmatpush1.msra.mxu0 0.0
        %821 = vmatprep.subr.mxu0 0.0
        %822 = vmatpush1.msra.mxu0 0.0
        %823 = vmatprep.subr.mxu0 0.0
        %824 = vmatpush1.msra.mxu0 0.0
        %825 = vmatprep.subr.mxu0 0.0
        %826 = vmatpush1.msra.mxu0 0.0
        %827 = vmatprep.subr.mxu0 0.0
        %828 = vmatpush1.msra.mxu0 0.0
        %829 = vmatprep.subr.mxu0 0.0
        %830 = vmatpush1.msra.mxu0 0.0
        %831 = vmatprep.subr.mxu0 0.0
        %832 = vmatpush1.msra.mxu0 0.0
        %833 = vmatprep.subr.mxu0 0.0
        %834 = vmatpush1.msra.mxu0 0.0
        %835 = vmatprep.subr.mxu0 0.0
        %836 = vmatpush1.msra.mxu0 0.0
        %837 = vmatprep.subr.mxu0 0.0
        %838 = vmatpush1.msra.mxu0 0.0
        %839 = vmatprep.subr.mxu0 0.0
        %840 = vmatpush1.msra.mxu0 0.0
        %841 = vmatprep.subr.mxu0 0.0
        %842 = vmatpush1.msra.mxu0 0.0
        %843 = vmatprep.subr.mxu0 0.0
        %844 = vmatpush1.msra.mxu0 0.0
        %845 = vmatprep.subr.mxu0 0.0
        %846 = vmatpush1.msra.mxu0 0.0
        %847 = vmatprep.subr.mxu0 0.0
        %848 = vmatpush1.msra.mxu0 0.0
        %849 = vmatprep.subr.mxu0 0.0
        %850 = vmatpush1.msra.mxu0 0.0
        %851 = vmatprep.subr.mxu0 0.0
        %852 = vmatpush1.msra.mxu0 0.0
        %853 = vmatprep.subr.mxu0 0.0
        %854 = vmatpush1.msra.mxu0 0.0
        %855 = vmatprep.subr.mxu0 0.0
        %856 = vmatpush1.msra.mxu0 0.0
        %857 = vmatprep.subr.mxu0 0.0
        %858 = vmatpush1.msra.mxu0 0.0
        %859 = vmatprep.subr.mxu0 0.0
        %860 = vmatpush1.msra.mxu0 0.0
        %861 = vmatprep.subr.mxu0 0.0
        %862 = vmatpush1.msra.mxu0 0.0
        %863 = vmatprep.subr.mxu0 0.0
        %864 = vmatpush1.msra.mxu0 0.0
        %865 = vmatprep.subr.mxu0 0.0
        %866 = vmatpush1.msra.mxu0 0.0
        %867 = vmatprep.mubr.f32.mxu0 0.0
        %868 = vmatmul.mubr.f32.gmra.mrb[0].mxu0 %v801
        %v869 = vpop.f32.mrb[0].mxu0
        %v870 = vadd.f32 0.0, %v869
        %v871 = vpop.f32.mrb[0].mxu0
        %872 = vdwg.mxu0
        %v874 = vsel %vm360, %v738, 0
        %876 = vmatprep.subr.mxu0 0.0
        %877 = vmatpush1.msra.mxu0 %v357
        %878 = vmatprep.subr.mxu0 0.0
        %879 = vmatpush1.msra.mxu0 0.0
        %880 = vmatprep.subr.mxu0 0.0
        %881 = vmatpush1.msra.mxu0 0.0
        %882 = vmatprep.subr.mxu0 0.0
        %883 = vmatpush1.msra.mxu0 0.0
        %884 = vmatprep.subr.mxu0 0.0
        %885 = vmatpush1.msra.mxu0 0.0
        %886 = vmatprep.subr.mxu0 0.0
        %887 = vmatpush1.msra.mxu0 0.0
        %888 = vmatprep.subr.mxu0 0.0
        %889 = vmatpush1.msra.mxu0 0.0
        %890 = vmatprep.subr.mxu0 0.0
        %891 = vmatpush1.msra.mxu0 0.0
        %892 = vmatprep.subr.mxu0 0.0
        %893 = vmatpush1.msra.mxu0 0.0
        %894 = vmatprep.subr.mxu0 0.0
        %895 = vmatpush1.msra.mxu0 0.0
        %896 = vmatprep.subr.mxu0 0.0
        %897 = vmatpush1.msra.mxu0 0.0
        %898 = vmatprep.subr.mxu0 0.0
        %899 = vmatpush1.msra.mxu0 0.0
        %900 = vmatprep.subr.mxu0 0.0
        %901 = vmatpush1.msra.mxu0 0.0
        %902 = vmatprep.subr.mxu0 0.0
        %903 = vmatpush1.msra.mxu0 0.0
        %904 = vmatprep.subr.mxu0 0.0
        %905 = vmatpush1.msra.mxu0 0.0
        %906 = vmatprep.subr.mxu0 0.0
        %907 = vmatpush1.msra.mxu0 0.0
        %908 = vmatprep.subr.mxu0 0.0
        %909 = vmatpush1.msra.mxu0 0.0
        %910 = vmatprep.subr.mxu0 0.0
        %911 = vmatpush1.msra.mxu0 0.0
        %912 = vmatprep.subr.mxu0 0.0
        %913 = vmatpush1.msra.mxu0 0.0
        %914 = vmatprep.subr.mxu0 0.0
        %915 = vmatpush1.msra.mxu0 0.0
        %916 = vmatprep.subr.mxu0 0.0
        %917 = vmatpush1.msra.mxu0 0.0
        %918 = vmatprep.subr.mxu0 0.0
        %919 = vmatpush1.msra.mxu0 0.0
        %920 = vmatprep.subr.mxu0 0.0
        %921 = vmatpush1.msra.mxu0 0.0
        %922 = vmatprep.subr.mxu0 0.0
        %923 = vmatpush1.msra.mxu0 0.0
        %924 = vmatprep.subr.mxu0 0.0
        %925 = vmatpush1.msra.mxu0 0.0
        %926 = vmatprep.subr.mxu0 0.0
        %927 = vmatpush1.msra.mxu0 0.0
        %928 = vmatprep.subr.mxu0 0.0
        %929 = vmatpush1.msra.mxu0 0.0
        %930 = vmatprep.subr.mxu0 0.0
        %931 = vmatpush1.msra.mxu0 0.0
        %932 = vmatprep.subr.mxu0 0.0
        %933 = vmatpush1.msra.mxu0 0.0
        %934 = vmatprep.subr.mxu0 0.0
        %935 = vmatpush1.msra.mxu0 0.0
        %936 = vmatprep.subr.mxu0 0.0
        %937 = vmatpush1.msra.mxu0 0.0
        %938 = vmatprep.subr.mxu0 0.0
        %939 = vmatpush1.msra.mxu0 0.0
        %940 = vmatprep.mubr.f32.mxu0 0.0
        %941 = vmatmul.mubr.f32.gmra.mrb[0].mxu0 %v874
        %v942 = vpop.f32.mrb[0].mxu0
        %v943 = vadd.f32 0.0, %v942
        %v944 = vpop.f32.mrb[0].mxu0
        %945 = vdwg.mxu0
        %v947 = vsel %vm360, %v740, 0
        %949 = vmatprep.subr.mxu0 0.0
        %950 = vmatpush1.msra.mxu0 %v358
        %951 = vmatprep.subr.mxu0 0.0
        %952 = vmatpush1.msra.mxu0 0.0
        %953 = vmatprep.subr.mxu0 0.0
        %954 = vmatpush1.msra.mxu0 0.0
        %955 = vmatprep.subr.mxu0 0.0
        %956 = vmatpush1.msra.mxu0 0.0
        %957 = vmatprep.subr.mxu0 0.0
        %958 = vmatpush1.msra.mxu0 0.0
        %959 = vmatprep.subr.mxu0 0.0
        %960 = vmatpush1.msra.mxu0 0.0
        %961 = vmatprep.subr.mxu0 0.0
        %962 = vmatpush1.msra.mxu0 0.0
        %963 = vmatprep.subr.mxu0 0.0
        %964 = vmatpush1.msra.mxu0 0.0
        %965 = vmatprep.subr.mxu0 0.0
        %966 = vmatpush1.msra.mxu0 0.0
        %967 = vmatprep.subr.mxu0 0.0
        %968 = vmatpush1.msra.mxu0 0.0
        %969 = vmatprep.subr.mxu0 0.0
        %970 = vmatpush1.msra.mxu0 0.0
        %971 = vmatprep.subr.mxu0 0.0
        %972 = vmatpush1.msra.mxu0 0.0
        %973 = vmatprep.subr.mxu0 0.0
        %974 = vmatpush1.msra.mxu0 0.0
        %975 = vmatprep.subr.mxu0 0.0
        %976 = vmatpush1.msra.mxu0 0.0
        %977 = vmatprep.subr.mxu0 0.0
        %978 = vmatpush1.msra.mxu0 0.0
        %979 = vmatprep.subr.mxu0 0.0
        %980 = vmatpush1.msra.mxu0 0.0
        %981 = vmatprep.subr.mxu0 0.0
        %982 = vmatpush1.msra.mxu0 0.0
        %983 = vmatprep.subr.mxu0 0.0
        %984 = vmatpush1.msra.mxu0 0.0
        %985 = vmatprep.subr.mxu0 0.0
        %986 = vmatpush1.msra.mxu0 0.0
        %987 = vmatprep.subr.mxu0 0.0
        %988 = vmatpush1.msra.mxu0 0.0
        %989 = vmatprep.subr.mxu0 0.0
        %990 = vmatpush1.msra.mxu0 0.0
        %991 = vmatprep.subr.mxu0 0.0
        %992 = vmatpush1.msra.mxu0 0.0
        %993 = vmatprep.subr.mxu0 0.0
        %994 = vmatpush1.msra.mxu0 0.0
        %995 = vmatprep.subr.mxu0 0.0
        %996 = vmatpush1.msra.mxu0 0.0
        %997 = vmatprep.subr.mxu0 0.0
        %998 = vmatpush1.msra.mxu0 0.0
        %999 = vmatprep.subr.mxu0 0.0
        %1000 = vmatpush1.msra.mxu0 0.0
        %1001 = vmatprep.subr.mxu0 0.0
        %1002 = vmatpush1.msra.mxu0 0.0
        %1003 = vmatprep.subr.mxu0 0.0
        %1004 = vmatpush1.msra.mxu0 0.0
        %1005 = vmatprep.subr.mxu0 0.0
        %1006 = vmatpush1.msra.mxu0 0.0
        %1007 = vmatprep.subr.mxu0 0.0
        %1008 = vmatpush1.msra.mxu0 0.0
        %1009 = vmatprep.subr.mxu0 0.0
        %1010 = vmatpush1.msra.mxu0 0.0
        %1011 = vmatprep.subr.mxu0 0.0
        %1012 = vmatpush1.msra.mxu0 0.0
        %1013 = vmatprep.mubr.f32.mxu0 0.0
        %1014 = vmatmul.mubr.f32.gmra.mrb[0].mxu0 %v947
        %v1015 = vpop.f32.mrb[0].mxu0
        %v1016 = vadd.f32 0.0, %v1015
        %v1017 = vpop.f32.mrb[0].mxu0
        %1018 = vdwg.mxu0
        %v1020 = vsel %vm360, %v742, 0
        %1022 = vmatprep.subr.mxu0 0.0
        %1023 = vmatpush1.msra.mxu0 %v359
        %1024 = vmatprep.subr.mxu0 0.0
        %1025 = vmatpush1.msra.mxu0 0.0
        %1026 = vmatprep.subr.mxu0 0.0
        %1027 = vmatpush1.msra.mxu0 0.0
        %1028 = vmatprep.subr.mxu0 0.0
        %1029 = vmatpush1.msra.mxu0 0.0
        %1030 = vmatprep.subr.mxu0 0.0
        %1031 = vmatpush1.msra.mxu0 0.0
        %1032 = vmatprep.subr.mxu0 0.0
        %1033 = vmatpush1.msra.mxu0 0.0
        %1034 = vmatprep.subr.mxu0 0.0
        %1035 = vmatpush1.msra.mxu0 0.0
        %1036 = vmatprep.subr.mxu0 0.0
        %1037 = vmatpush1.msra.mxu0 0.0
        %1038 = vmatprep.subr.mxu0 0.0
        %1039 = vmatpush1.msra.mxu0 0.0
        %1040 = vmatprep.subr.mxu0 0.0
        %1041 = vmatpush1.msra.mxu0 0.0
        %1042 = vmatprep.subr.mxu0 0.0
        %1043 = vmatpush1.msra.mxu0 0.0
        %1044 = vmatprep.subr.mxu0 0.0
        %1045 = vmatpush1.msra.mxu0 0.0
        %1046 = vmatprep.subr.mxu0 0.0
        %1047 = vmatpush1.msra.mxu0 0.0
        %1048 = vmatprep.subr.mxu0 0.0
        %1049 = vmatpush1.msra.mxu0 0.0
        %1050 = vmatprep.subr.mxu0 0.0
        %1051 = vmatpush1.msra.mxu0 0.0
        %1052 = vmatprep.subr.mxu0 0.0
        %1053 = vmatpush1.msra.mxu0 0.0
        %1054 = vmatprep.subr.mxu0 0.0
        %1055 = vmatpush1.msra.mxu0 0.0
        %1056 = vmatprep.subr.mxu0 0.0
        %1057 = vmatpush1.msra.mxu0 0.0
        %1058 = vmatprep.subr.mxu0 0.0
        %1059 = vmatpush1.msra.mxu0 0.0
        %1060 = vmatprep.subr.mxu0 0.0
        %1061 = vmatpush1.msra.mxu0 0.0
        %1062 = vmatprep.subr.mxu0 0.0
        %1063 = vmatpush1.msra.mxu0 0.0
        %1064 = vmatprep.subr.mxu0 0.0
        %1065 = vmatpush1.msra.mxu0 0.0
        %1066 = vmatprep.subr.mxu0 0.0
        %1067 = vmatpush1.msra.mxu0 0.0
        %1068 = vmatprep.subr.mxu0 0.0
        %1069 = vmatpush1.msra.mxu0 0.0
        %1070 = vmatprep.subr.mxu0 0.0
        %1071 = vmatpush1.msra.mxu0 0.0
        %1072 = vmatprep.subr.mxu0 0.0
        %1073 = vmatpush1.msra.mxu0 0.0
        %1074 = vmatprep.subr.mxu0 0.0
        %1075 = vmatpush1.msra.mxu0 0.0
        %1076 = vmatprep.subr.mxu0 0.0
        %1077 = vmatpush1.msra.mxu0 0.0
        %1078 = vmatprep.subr.mxu0 0.0
        %1079 = vmatpush1.msra.mxu0 0.0
        %1080 = vmatprep.subr.mxu0 0.0
        %1081 = vmatpush1.msra.mxu0 0.0
        %1082 = vmatprep.subr.mxu0 0.0
        %1083 = vmatpush1.msra.mxu0 0.0
        %1084 = vmatprep.subr.mxu0 0.0
        %1085 = vmatpush1.msra.mxu0 0.0
        %1086 = vmatprep.mubr.f32.mxu0 0.0
        %1087 = vmatmul.mubr.f32.gmra.mrb[0].mxu0 %v1020
        %v1088 = vpop.f32.mrb[0].mxu0
        %v1089 = vadd.f32 0.0, %v1088
        %v1090 = vpop.f32.mrb[0].mxu0
        %1091 = vdwg.mxu0
        %v1092 = vadd.f32 %v796, %v870
        %v1093 = vadd.f32 %v797, %v943
        %v1094 = vadd.f32 %v798, %v1016
        %v1095 = vadd.f32 %v799, %v1089
        %1096 = vst.msk [vmem:[#allocation4] sm:$0xff] %vm360, %v1092
        %1097 = vst.msk [vmem:[#allocation4 + $0x8] sm:$0xff] %vm360, %v1093
        %1098 = vst.msk [vmem:[#allocation4 + $0x10] sm:$0xff] %vm360, %v1094
        %1099 = vst.msk [vmem:[#allocation4 + $0x18] sm:$0xff] %vm360, %v1095
        %1100 = vst.msk [vmem:[#allocation2] sm:$0xff] %vm767, %v695
        %1101 = vst.msk [vmem:[#allocation2 + $0x8] sm:$0xff] %vm767, %v696
        %1102 = vst.msk [vmem:[#allocation2 + $0x10] sm:$0xff] %vm767, %v697
        %1103 = vst.msk [vmem:[#allocation2 + $0x18] sm:$0xff] %vm767, %v698
        // Predicated region
        $region49: #{tpu_custom_call.1} parent=31 // pred_check
          %p1104 = pneg %p326
        $region50: #{tpu_custom_call.1} parent=31 // pred_check_branch
          %1106 = sbr.rel (%p1104) target = $region52
        $region51: #{tpu_custom_call.1} parent=31 // pred_region
          %v1107 = vld [vmem:[#allocation3] sm:$0xff]
          %v1108 = vld [vmem:[#allocation3 + $0x8] sm:$0xff]
          %v1109 = vld [vmem:[#allocation3 + $0x10] sm:$0xff]
          %v1110 = vld [vmem:[#allocation3 + $0x18] sm:$0xff]
          %v1111 = vrcp.pop %v1107
          %v1112 = vrcp.pop %v1108
          %v1113 = vrcp.pop %v1109
          %v1114 = vrcp.pop %v1110
          %v1115 = vld [vmem:[#allocation4] sm:$0xff]
          %v1116 = vld [vmem:[#allocation4 + $0x8] sm:$0xff]
          %v1117 = vld [vmem:[#allocation4 + $0x10] sm:$0xff]
          %v1118 = vld [vmem:[#allocation4 + $0x18] sm:$0xff]
          %1120 = vset.pattern.permute.xlu0 0
          %1121 = vperm.xlu0 %1120, %v1111
          %v1122 = vpop.permute.xlu0 %1121
          %1125 = vset.pattern.permute.xlu0 0
          %1126 = vperm.xlu0 %1125, %v1112
          %v1127 = vpop.permute.xlu0 %1126
          %1130 = vset.pattern.permute.xlu0 0
          %1131 = vperm.xlu0 %1130, %v1113
          %v1132 = vpop.permute.xlu0 %1131
          %1135 = vset.pattern.permute.xlu0 0
          %1136 = vperm.xlu0 %1135, %v1114
          %v1137 = vpop.permute.xlu0 %1136
          %v1139 = vmul.f32 %v1115, %v1122
          %v1140 = vmul.f32 %v1116, %v1127
          %v1141 = vmul.f32 %v1117, %v1132
          %v1142 = vmul.f32 %v1118, %v1137
          %1143 = vst.msk [vmem:[%s321] sm:$0xff] %vm360, %v1139
          %1144 = vst.msk [vmem:[%s321 + $0x8] sm:$0xff] %vm360, %v1140
          %1145 = vst.msk [vmem:[%s321 + $0x10] sm:$0xff] %vm360, %v1141
          %1146 = vst.msk [vmem:[%s321 + $0x18] sm:$0xff] %vm360, %v1142
        $region52: #{tpu_custom_call.1} parent=31 // pred_fallthru
          _
        %s1147 = sand.u32 %s156, 1
        %s1148 = scalar_lea.sflag [#allocation9], %s1147
        %s1149 = sand.u32 %s156, 1
        %s1150 = smul.addr %s1149, 32
        %s1151 = scalar_lea.vmem [#allocation13], %s1150
        // Predicated region
        $region53: #{tpu_custom_call.1} parent=31 // pred_check
          %p1152 = pneg %p166
        $region54: #{tpu_custom_call.1} parent=31 // pred_check_branch
          %1154 = sbr.rel (%p1152) target = $region56
        $region55: #{tpu_custom_call.1} parent=31 // pred_region
          %s1155 = smul.u32 4, %s35
          %s1157 = ssub.s32 512, 512
          %1158 = vsyncadd %s1148, %s1157
          %s1159 = sadd.s32 %s36, %s1155
          %s1160 = smul.addr %s34, 4
          %s1161 = sadd.s32 %s1159, %s1160
          %s1162 = smul.addr %s1161, 128
          %s1163 = scalar_lea.hbm %s4, %s1162
          %s1164 = sshll.u32 %s1151, 4
          %s1165 = int_to_ptr.vmem [resolvable:$true] %s1164
          %1170 = dma.vmem_to_hbm [thread:$0]  %s1165, 512, %s1163, %s1148, 128, 128, 8
        $region56: #{tpu_custom_call.1} parent=31 // pred_fallthru
          _
      $region32: #{tpu_custom_call.1} parent=5 // pred_fallthru
        _
      %p1171 = scmp.le.s32.totalorder 2, %s23
      // Predicated region
      $region57: #{tpu_custom_call.1} parent=5 // pred_check
        %p1172 = pneg %p1171
      $region58: #{tpu_custom_call.1} parent=5 // pred_check_branch
        %1174 = sbr.rel (%p1172) target = $region60
      $region59: #{tpu_custom_call.1} parent=5 // pred_region
        %s1175 = ssub.s32 %s23, 2
        // Predicated region
        $region61: #{tpu_custom_call.1} parent=59 // pred_check
          %p1176 = pneg %p172
        $region62: #{tpu_custom_call.1} parent=59 // pred_check_branch
          %1178 = sbr.rel (%p1176) target = $region64
        $region63: #{tpu_custom_call.1} parent=59 // pred_region
          %s1179 = sand.u32 %s157, 1
          %s1180 = scalar_lea.sflag [#allocation9], %s1179
          %s1181 = sand.u32 %s157, 1
          %s1182 = smul.addr %s1181, 32
          %s1183 = scalar_lea.vmem [#allocation13], %s1182
          %1184 = dma.done %s1180, 512
        $region64: #{tpu_custom_call.1} parent=59 // pred_fallthru
          _
      $region60: #{tpu_custom_call.1} parent=5 // pred_fallthru
        _
    $region6: #{tpu_custom_call.1} parent=1 // loop_footer
      %s27 = sadd.s32 1, %s23
    $region7: #{tpu_custom_call.1} parent=1 // loop_footer_branch
      %22 = sbr.rel target = $region3
    $region8: #{tpu_custom_call.1} parent=1 // loop_exit
      _
    %1185 = vsyncpa [#allocation8], 1
    %s1186 = scalar_lea.sflag [#allocation8], 1
    %1187 = vsyncpa %s1186, 1
    %1188 = vsyncpa [#allocation11], 1
    %s1189 = scalar_lea.sflag [#allocation11], 1
    %1190 = vsyncpa %s1189, 1
    %1191 = vsyncpa [#allocation9], 1
    %s1192 = scalar_lea.sflag [#allocation9], 1
    %1193 = vsyncpa %s1192, 1

</llo_original>
